<compile_context>
chip_gen: v5e
topology: v5e:2x2
jax: 0.10.0
libtpu: 0.0.40
codegen_flags: <defaults>
</compile_context>

<pallas_src>
import jax
import jax.numpy as jnp
import numpy as np
from jax.experimental import pallas as pl
from jax.experimental.pallas import tpu as pltpu

KERNEL_SIZE = 7
PAD = KERNEL_SIZE // 2
LANES = 128
SUBLANES = 8


def _make_kernel(C, H, W, K, P, TB, Hs, WL):
    R = TB * Hs          # rows of the stacked conv domain (one Hs-pitch slab per image)
    TOP = SUBLANES       # zero rows above the first image (aligned, >= P)

    def kernel(w_ref, x_ref, o_ref, plane_ref):
        # w_ref    : (2*K*K,) f32 in SMEM; w[:K*K] already scaled by 1/C.
        # x_ref    : (TB, C, H, W) input tile in VMEM (native dtype).
        # o_ref    : (TB, H, WL) lane-dense output slab (cols >= W are junk).
        # plane_ref: (2, TOP + R + SUBLANES, WL) f32 scratch (zero-bordered
        #            channel-sum / channel-max planes).

        # ---- fused single-pass channel sum + max (one walk over x) ----
        x0 = x_ref[:, 0].astype(jnp.float32)            # (TB, H, W)
        s = x0
        m = x0
        for c in range(1, C):
            xc = x_ref[:, c].astype(jnp.float32)
            s = s + xc
            m = jnp.maximum(m, xc)

        # ---- build zero-padded, lane-dense planes ----
        # Zeroing each step keeps the border valid even if the "parallel"
        # grid axis is split across cores; it's only ~64 KiB of VPU stores
        # and happens once here (single grid step for this batch).
        plane_ref[...] = jnp.zeros_like(plane_ref)
        for i in range(TB):
            r0 = TOP + i * Hs                           # multiple of 8 -> aligned rows
            plane_ref[0, r0:r0 + H, 0:W] = s[i]
            plane_ref[1, r0:r0 + H, 0:W] = m[i]

        # ---- 7x7 conv: row-offset slabs + lane rolls + scalar-weight MACs ----
        acc0 = jnp.zeros((R, WL), jnp.float32)
        acc1 = jnp.zeros((R, WL), jnp.float32)
        idx = 0
        for c2 in range(2):                             # 0: avg(sum) plane, 1: max plane
            for kh in range(K):
                row0 = TOP - P + kh
                slab = plane_ref[c2, row0:row0 + R, :]  # (R, WL) row-shifted view
                for kw in range(K):
                    if kw == P:
                        t = slab
                    else:
                        # t[g, l] = slab[g, (l + kw - P) mod WL]; wrapped lanes
                        # only ever read the zero border, so this is exact.
                        t = pltpu.roll(slab, shift=(P - kw) % WL, axis=1)
                    wv = w_ref[c2 * K * K + kh * K + kw]
                    if idx % 2 == 0:
                        acc0 = acc0 + wv * t
                    else:
                        acc1 = acc1 + wv * t
                    idx += 1
        acc = acc0 + acc1

        # ---- sigmoid + lane-dense (unmasked, full-vreg) stores ----
        for i in range(TB):
            rows = acc[i * Hs:i * Hs + H, :]            # aligned value slice
            o_ref[i] = jax.nn.sigmoid(rows).astype(o_ref.dtype)

    return kernel


def spatial_attention(x, w):
    """x: (B, C, H, W); w: (1, 2, K, K) conv weight (OIHW). Returns (B, 1, H, W)."""
    B, C, H, W = x.shape
    K = w.shape[-1]
    P = K // 2
    assert W + P <= LANES, "this kernel assumes one padded image row fits in 128 lanes"

    # Fold the 1/C of the channel mean into the avg-channel weights; flatten
    # to [c, kh, kw] order for cheap scalar reads from SMEM.
    scale = jnp.array([1.0 / C, 1.0], jnp.float32).reshape(1, 2, 1, 1)
    w_flat = (w.astype(jnp.float32) * scale).reshape(-1)

    TB = B                                # whole batch per grid step (tiny working set)
    nb = B // TB
    Hs = ((H + SUBLANES - 1) // SUBLANES) * SUBLANES + SUBLANES   # per-image row pitch
    WL = LANES
    R = TB * Hs
    n_rows = SUBLANES + R + SUBLANES      # top zero pad + stacked slabs + bottom zero pad

    kernel = _make_kernel(C, H, W, K, P, TB, Hs, WL)
    out_slab = pl.pallas_call(
        kernel,
        out_shape=jax.ShapeDtypeStruct((B, H, WL), x.dtype),
        grid=(nb,),
        in_specs=[
            pl.BlockSpec(memory_space=pltpu.MemorySpace.SMEM),        # conv weights
            pl.BlockSpec((TB, C, H, W), lambda b: (b, 0, 0, 0)),      # input tile
        ],
        out_specs=pl.BlockSpec((TB, H, WL), lambda b: (b, 0, 0)),
        scratch_shapes=[pltpu.VMEM((2, n_rows, WL), jnp.float32)],
        compiler_params=pltpu.CompilerParams(
            dimension_semantics=("parallel",),
            vmem_limit_bytes=32 * 1024 * 1024,
        ),
    )(w_flat, x)

    # Slice the valid W lanes out of the lane-dense slab and restore NCHW.
    return out_slab[:, None, :, :W]


def reference(x, w):
    """Pure-JAX reference mirroring the PyTorch module."""
    avg = jnp.mean(x, axis=1, keepdims=True)
    mx = jnp.max(x, axis=1, keepdims=True)
    xin = jnp.concatenate([avg, mx], axis=1)
    out = jax.lax.conv_general_dilated(
        xin, w, window_strides=(1, 1),
        padding=((PAD, PAD), (PAD, PAD)),
        dimension_numbers=("NCHW", "OIHW", "NCHW"))
    return jax.nn.sigmoid(out)


if __name__ == "__main__":
    key = jax.random.PRNGKey(0)
    kx, kw = jax.random.split(key)

    B, C, H, W = 2, 4, 16, 16
    x = jax.random.normal(kx, (B, C, H, W), dtype=jnp.float32)

    # Deterministic conv1 weight init: shape (1, 2, K, K), uniform(+-1/sqrt(fan_in))
    fan_in = 2 * KERNEL_SIZE * KERNEL_SIZE
    bound = 1.0 / np.sqrt(fan_in)
    w = jax.random.uniform(kw, (1, 2, KERNEL_SIZE, KERNEL_SIZE),
                           minval=-bound, maxval=bound, dtype=jnp.float32)

    out = spatial_attention(x, w)
    out = jax.block_until_ready(out)

    ref = jax.block_until_ready(reference(x, w))
    assert out.shape == (B, 1, H, W), out.shape
    np.testing.assert_allclose(np.asarray(out), np.asarray(ref), atol=1e-5, rtol=1e-5)

    print("KERNEL_OK")
</pallas_src>

<mosaic_0001>
module attributes {stable_mosaic.version = 11 : i64} {
  func.func @kernel(%arg0: i32, %arg1: memref<98xf32, #tpu.memory_space<smem>>, %arg2: memref<2x4x16x16xf32, #tpu.memory_space<vmem>>, %arg3: memref<2x16x128xf32, #tpu.memory_space<vmem>>, %arg4: memref<2x64x128xf32, #tpu.memory_space<vmem>>) attributes {dimension_semantics = [#tpu.dimension_semantics<parallel>], iteration_bounds = array<i64: 1>, scalar_prefetch = 0 : i64, scratch_operands = 1 : i64, tpu.core_type = #tpu.core_type<tc>, window_params = [{transform_indices = @transform_0, window_bounds = array<i64: 98>}, {transform_indices = @transform_1, window_bounds = array<i64: 2, 4, 16, 16>}, {transform_indices = @transform_2, window_bounds = array<i64: 2, 16, 128>}]} {
    %c0 = arith.constant 0 : index
    %c0_0 = arith.constant 0 : index
    %c0_1 = arith.constant 0 : index
    %c0_2 = arith.constant 0 : index
    %0 = vector.load %arg2[%c0, %c0_0, %c0_1, %c0_2] : memref<2x4x16x16xf32, #tpu.memory_space<vmem>>, vector<2x1x16x16xf32>
    %1 = vector.shape_cast %0 : vector<2x1x16x16xf32> to vector<2x16x16xf32>
    %c0_3 = arith.constant 0 : index
    %c1 = arith.constant 1 : index
    %c0_4 = arith.constant 0 : index
    %c0_5 = arith.constant 0 : index
    %2 = vector.load %arg2[%c0_3, %c1, %c0_4, %c0_5] : memref<2x4x16x16xf32, #tpu.memory_space<vmem>>, vector<2x1x16x16xf32>
    %3 = vector.shape_cast %2 : vector<2x1x16x16xf32> to vector<2x16x16xf32>
    %4 = arith.addf %1, %3 : vector<2x16x16xf32>
    %5 = arith.maximumf %1, %3 : vector<2x16x16xf32>
    %c0_6 = arith.constant 0 : index
    %c2 = arith.constant 2 : index
    %c0_7 = arith.constant 0 : index
    %c0_8 = arith.constant 0 : index
    %6 = vector.load %arg2[%c0_6, %c2, %c0_7, %c0_8] : memref<2x4x16x16xf32, #tpu.memory_space<vmem>>, vector<2x1x16x16xf32>
    %7 = vector.shape_cast %6 : vector<2x1x16x16xf32> to vector<2x16x16xf32>
    %8 = arith.addf %4, %7 : vector<2x16x16xf32>
    %9 = arith.maximumf %5, %7 : vector<2x16x16xf32>
    %c0_9 = arith.constant 0 : index
    %c3 = arith.constant 3 : index
    %c0_10 = arith.constant 0 : index
    %c0_11 = arith.constant 0 : index
    %10 = vector.load %arg2[%c0_9, %c3, %c0_10, %c0_11] : memref<2x4x16x16xf32, #tpu.memory_space<vmem>>, vector<2x1x16x16xf32>
    %11 = vector.shape_cast %10 : vector<2x1x16x16xf32> to vector<2x16x16xf32>
    %12 = arith.addf %8, %11 : vector<2x16x16xf32>
    %13 = arith.maximumf %9, %11 : vector<2x16x16xf32>
    %cst = arith.constant 0.000000e+00 : f32
    %14 = vector.broadcast %cst : f32 to vector<2x64x128xf32>
    %c0_12 = arith.constant 0 : index
    %c0_13 = arith.constant 0 : index
    %c0_14 = arith.constant 0 : index
    %15 = vector.load %arg4[%c0_12, %c0_13, %c0_14] : memref<2x64x128xf32, #tpu.memory_space<vmem>>, vector<2x64x128xf32>
    tpu.vector_store %arg4[%c0_12, %c0_13, %c0_14], %14 {strides = array<i32>} : memref<2x64x128xf32, #tpu.memory_space<vmem>>, vector<2x64x128xf32>,
    %16 = vector.extract_strided_slice %12 {offsets = [0, 0, 0], sizes = [1, 16, 16], strides = [1, 1, 1]} : vector<2x16x16xf32> to vector<1x16x16xf32>
    %17 = vector.shape_cast %16 : vector<1x16x16xf32> to vector<16x16xf32>
    %c0_15 = arith.constant 0 : index
    %c8 = arith.constant 8 : index
    %c0_16 = arith.constant 0 : index
    %18 = vector.load %arg4[%c0_15, %c8, %c0_16] : memref<2x64x128xf32, #tpu.memory_space<vmem>>, vector<1x16x16xf32>
    %19 = vector.shape_cast %18 : vector<1x16x16xf32> to vector<16x16xf32>
    %20 = vector.shape_cast %17 : vector<16x16xf32> to vector<1x16x16xf32>
    tpu.vector_store %arg4[%c0_15, %c8, %c0_16], %20 {strides = array<i32>} : memref<2x64x128xf32, #tpu.memory_space<vmem>>, vector<1x16x16xf32>,
    %21 = vector.extract_strided_slice %13 {offsets = [0, 0, 0], sizes = [1, 16, 16], strides = [1, 1, 1]} : vector<2x16x16xf32> to vector<1x16x16xf32>
    %22 = vector.shape_cast %21 : vector<1x16x16xf32> to vector<16x16xf32>
    %c1_17 = arith.constant 1 : index
    %c8_18 = arith.constant 8 : index
    %c0_19 = arith.constant 0 : index
    %23 = vector.load %arg4[%c1_17, %c8_18, %c0_19] : memref<2x64x128xf32, #tpu.memory_space<vmem>>, vector<1x16x16xf32>
    %24 = vector.shape_cast %23 : vector<1x16x16xf32> to vector<16x16xf32>
    %25 = vector.shape_cast %22 : vector<16x16xf32> to vector<1x16x16xf32>
    tpu.vector_store %arg4[%c1_17, %c8_18, %c0_19], %25 {strides = array<i32>} : memref<2x64x128xf32, #tpu.memory_space<vmem>>, vector<1x16x16xf32>,
    %26 = vector.extract_strided_slice %12 {offsets = [1, 0, 0], sizes = [1, 16, 16], strides = [1, 1, 1]} : vector<2x16x16xf32> to vector<1x16x16xf32>
    %27 = vector.shape_cast %26 : vector<1x16x16xf32> to vector<16x16xf32>
    %c0_20 = arith.constant 0 : index
    %c32 = arith.constant 32 : index
    %c0_21 = arith.constant 0 : index
    %28 = vector.load %arg4[%c0_20, %c32, %c0_21] : memref<2x64x128xf32, #tpu.memory_space<vmem>>, vector<1x16x16xf32>
    %29 = vector.shape_cast %28 : vector<1x16x16xf32> to vector<16x16xf32>
    %30 = vector.shape_cast %27 : vector<16x16xf32> to vector<1x16x16xf32>
    tpu.vector_store %arg4[%c0_20, %c32, %c0_21], %30 {strides = array<i32>} : memref<2x64x128xf32, #tpu.memory_space<vmem>>, vector<1x16x16xf32>,
    %31 = vector.extract_strided_slice %13 {offsets = [1, 0, 0], sizes = [1, 16, 16], strides = [1, 1, 1]} : vector<2x16x16xf32> to vector<1x16x16xf32>
    %32 = vector.shape_cast %31 : vector<1x16x16xf32> to vector<16x16xf32>
    %c1_22 = arith.constant 1 : index
    %c32_23 = arith.constant 32 : index
    %c0_24 = arith.constant 0 : index
    %33 = vector.load %arg4[%c1_22, %c32_23, %c0_24] : memref<2x64x128xf32, #tpu.memory_space<vmem>>, vector<1x16x16xf32>
    %34 = vector.shape_cast %33 : vector<1x16x16xf32> to vector<16x16xf32>
    %35 = vector.shape_cast %32 : vector<16x16xf32> to vector<1x16x16xf32>
    tpu.vector_store %arg4[%c1_22, %c32_23, %c0_24], %35 {strides = array<i32>} : memref<2x64x128xf32, #tpu.memory_space<vmem>>, vector<1x16x16xf32>,
    %cst_25 = arith.constant 0.000000e+00 : f32
    %36 = vector.broadcast %cst_25 : f32 to vector<48x128xf32>
    %cst_26 = arith.constant 0.000000e+00 : f32
    %37 = vector.broadcast %cst_26 : f32 to vector<48x128xf32>
    %c0_27 = arith.constant 0 : index
    %c5 = arith.constant 5 : index
    %c0_28 = arith.constant 0 : index
    %38 = vector.load %arg4[%c0_27, %c5, %c0_28] : memref<2x64x128xf32, #tpu.memory_space<vmem>>, vector<1x48x128xf32>
    %39 = vector.shape_cast %38 : vector<1x48x128xf32> to vector<48x128xf32>
    %c3_i32 = arith.constant 3 : i32
    %40 = tpu.dynamic_rotate %39 by %c3_i32 dim 1 : vector<48x128xf32>, i32 -> vector<48x128xf32>
    %c0_29 = arith.constant 0 : index
    %41 = memref.load %arg1[%c0_29] : memref<98xf32, #tpu.memory_space<smem>>
    %42 = vector.broadcast %41 : f32 to vector<48x128xf32>
    %43 = arith.mulf %42, %40 : vector<48x128xf32>
    %44 = arith.addf %36, %43 : vector<48x128xf32>
    %c2_i32 = arith.constant 2 : i32
    %45 = tpu.dynamic_rotate %39 by %c2_i32 dim 1 : vector<48x128xf32>, i32 -> vector<48x128xf32>
    %c1_30 = arith.constant 1 : index
    %46 = memref.load %arg1[%c1_30] : memref<98xf32, #tpu.memory_space<smem>>
    %47 = vector.broadcast %46 : f32 to vector<48x128xf32>
    %48 = arith.mulf %47, %45 : vector<48x128xf32>
    %49 = arith.addf %37, %48 : vector<48x128xf32>
    %c1_i32 = arith.constant 1 : i32
    %50 = tpu.dynamic_rotate %39 by %c1_i32 dim 1 : vector<48x128xf32>, i32 -> vector<48x128xf32>
    %c2_31 = arith.constant 2 : index
    %51 = memref.load %arg1[%c2_31] : memref<98xf32, #tpu.memory_space<smem>>
    %52 = vector.broadcast %51 : f32 to vector<48x128xf32>
    %53 = arith.mulf %52, %50 : vector<48x128xf32>
    %54 = arith.addf %44, %53 : vector<48x128xf32>
    %c3_32 = arith.constant 3 : index
    %55 = memref.load %arg1[%c3_32] : memref<98xf32, #tpu.memory_space<smem>>
    %56 = vector.broadcast %55 : f32 to vector<48x128xf32>
    %57 = arith.mulf %56, %39 : vector<48x128xf32>
    %58 = arith.addf %49, %57 : vector<48x128xf32>
    %c127_i32 = arith.constant 127 : i32
    %59 = tpu.dynamic_rotate %39 by %c127_i32 dim 1 : vector<48x128xf32>, i32 -> vector<48x128xf32>
    %c4 = arith.constant 4 : index
    %60 = memref.load %arg1[%c4] : memref<98xf32, #tpu.memory_space<smem>>
    %61 = vector.broadcast %60 : f32 to vector<48x128xf32>
    %62 = arith.mulf %61, %59 : vector<48x128xf32>
    %63 = arith.addf %54, %62 : vector<48x128xf32>
    %c126_i32 = arith.constant 126 : i32
    %64 = tpu.dynamic_rotate %39 by %c126_i32 dim 1 : vector<48x128xf32>, i32 -> vector<48x128xf32>
    %c5_33 = arith.constant 5 : index
    %65 = memref.load %arg1[%c5_33] : memref<98xf32, #tpu.memory_space<smem>>
    %66 = vector.broadcast %65 : f32 to vector<48x128xf32>
    %67 = arith.mulf %66, %64 : vector<48x128xf32>
    %68 = arith.addf %58, %67 : vector<48x128xf32>
    %c125_i32 = arith.constant 125 : i32
    %69 = tpu.dynamic_rotate %39 by %c125_i32 dim 1 : vector<48x128xf32>, i32 -> vector<48x128xf32>
    %c6 = arith.constant 6 : index
    %70 = memref.load %arg1[%c6] : memref<98xf32, #tpu.memory_space<smem>>
    %71 = vector.broadcast %70 : f32 to vector<48x128xf32>
    %72 = arith.mulf %71, %69 : vector<48x128xf32>
    %73 = arith.addf %63, %72 : vector<48x128xf32>
    %c0_34 = arith.constant 0 : index
    %c6_35 = arith.constant 6 : index
    %c0_36 = arith.constant 0 : index
    %74 = vector.load %arg4[%c0_34, %c6_35, %c0_36] : memref<2x64x128xf32, #tpu.memory_space<vmem>>, vector<1x48x128xf32>
    %75 = vector.shape_cast %74 : vector<1x48x128xf32> to vector<48x128xf32>
    %c3_i32_37 = arith.constant 3 : i32
    %76 = tpu.dynamic_rotate %75 by %c3_i32_37 dim 1 : vector<48x128xf32>, i32 -> vector<48x128xf32>
    %c7 = arith.constant 7 : index
    %77 = memref.load %arg1[%c7] : memref<98xf32, #tpu.memory_space<smem>>
    %78 = vector.broadcast %77 : f32 to vector<48x128xf32>
    %79 = arith.mulf %78, %76 : vector<48x128xf32>
    %80 = arith.addf %68, %79 : vector<48x128xf32>
    %c2_i32_38 = arith.constant 2 : i32
    %81 = tpu.dynamic_rotate %75 by %c2_i32_38 dim 1 : vector<48x128xf32>, i32 -> vector<48x128xf32>
    %c8_39 = arith.constant 8 : index
    %82 = memref.load %arg1[%c8_39] : memref<98xf32, #tpu.memory_space<smem>>
    %83 = vector.broadcast %82 : f32 to vector<48x128xf32>
    %84 = arith.mulf %83, %81 : vector<48x128xf32>
    %85 = arith.addf %73, %84 : vector<48x128xf32>
    %c1_i32_40 = arith.constant 1 : i32
    %86 = tpu.dynamic_rotate %75 by %c1_i32_40 dim 1 : vector<48x128xf32>, i32 -> vector<48x128xf32>
    %c9 = arith.constant 9 : index
    %87 = memref.load %arg1[%c9] : memref<98xf32, #tpu.memory_space<smem>>
    %88 = vector.broadcast %87 : f32 to vector<48x128xf32>
    %89 = arith.mulf %88, %86 : vector<48x128xf32>
    %90 = arith.addf %80, %89 : vector<48x128xf32>
    %c10 = arith.constant 10 : index
    %91 = memref.load %arg1[%c10] : memref<98xf32, #tpu.memory_space<smem>>
    %92 = vector.broadcast %91 : f32 to vector<48x128xf32>
    %93 = arith.mulf %92, %75 : vector<48x128xf32>
    %94 = arith.addf %85, %93 : vector<48x128xf32>
    %c127_i32_41 = arith.constant 127 : i32
    %95 = tpu.dynamic_rotate %75 by %c127_i32_41 dim 1 : vector<48x128xf32>, i32 -> vector<48x128xf32>
    %c11 = arith.constant 11 : index
    %96 = memref.load %arg1[%c11] : memref<98xf32, #tpu.memory_space<smem>>
    %97 = vector.broadcast %96 : f32 to vector<48x128xf32>
    %98 = arith.mulf %97, %95 : vector<48x128xf32>
    %99 = arith.addf %90, %98 : vector<48x128xf32>
    %c126_i32_42 = arith.constant 126 : i32
    %100 = tpu.dynamic_rotate %75 by %c126_i32_42 dim 1 : vector<48x128xf32>, i32 -> vector<48x128xf32>
    %c12 = arith.constant 12 : index
    %101 = memref.load %arg1[%c12] : memref<98xf32, #tpu.memory_space<smem>>
    %102 = vector.broadcast %101 : f32 to vector<48x128xf32>
    %103 = arith.mulf %102, %100 : vector<48x128xf32>
    %104 = arith.addf %94, %103 : vector<48x128xf32>
    %c125_i32_43 = arith.constant 125 : i32
    %105 = tpu.dynamic_rotate %75 by %c125_i32_43 dim 1 : vector<48x128xf32>, i32 -> vector<48x128xf32>
    %c13 = arith.constant 13 : index
    %106 = memref.load %arg1[%c13] : memref<98xf32, #tpu.memory_space<smem>>
    %107 = vector.broadcast %106 : f32 to vector<48x128xf32>
    %108 = arith.mulf %107, %105 : vector<48x128xf32>
    %109 = arith.addf %99, %108 : vector<48x128xf32>
    %c0_44 = arith.constant 0 : index
    %c7_45 = arith.constant 7 : index
    %c0_46 = arith.constant 0 : index
    %110 = vector.load %arg4[%c0_44, %c7_45, %c0_46] : memref<2x64x128xf32, #tpu.memory_space<vmem>>, vector<1x48x128xf32>
    %111 = vector.shape_cast %110 : vector<1x48x128xf32> to vector<48x128xf32>
    %c3_i32_47 = arith.constant 3 : i32
    %112 = tpu.dynamic_rotate %111 by %c3_i32_47 dim 1 : vector<48x128xf32>, i32 -> vector<48x128xf32>
    %c14 = arith.constant 14 : index
    %113 = memref.load %arg1[%c14] : memref<98xf32, #tpu.memory_space<smem>>
    %114 = vector.broadcast %113 : f32 to vector<48x128xf32>
    %115 = arith.mulf %114, %112 : vector<48x128xf32>
    %116 = arith.addf %104, %115 : vector<48x128xf32>
    %c2_i32_48 = arith.constant 2 : i32
    %117 = tpu.dynamic_rotate %111 by %c2_i32_48 dim 1 : vector<48x128xf32>, i32 -> vector<48x128xf32>
    %c15 = arith.constant 15 : index
    %118 = memref.load %arg1[%c15] : memref<98xf32, #tpu.memory_space<smem>>
    %119 = vector.broadcast %118 : f32 to vector<48x128xf32>
    %120 = arith.mulf %119, %117 : vector<48x128xf32>
    %121 = arith.addf %109, %120 : vector<48x128xf32>
    %c1_i32_49 = arith.constant 1 : i32
    %122 = tpu.dynamic_rotate %111 by %c1_i32_49 dim 1 : vector<48x128xf32>, i32 -> vector<48x128xf32>
    %c16 = arith.constant 16 : index
    %123 = memref.load %arg1[%c16] : memref<98xf32, #tpu.memory_space<smem>>
    %124 = vector.broadcast %123 : f32 to vector<48x128xf32>
    %125 = arith.mulf %124, %122 : vector<48x128xf32>
    %126 = arith.addf %116, %125 : vector<48x128xf32>
    %c17 = arith.constant 17 : index
    %127 = memref.load %arg1[%c17] : memref<98xf32, #tpu.memory_space<smem>>
    %128 = vector.broadcast %127 : f32 to vector<48x128xf32>
    %129 = arith.mulf %128, %111 : vector<48x128xf32>
    %130 = arith.addf %121, %129 : vector<48x128xf32>
    %c127_i32_50 = arith.constant 127 : i32
    %131 = tpu.dynamic_rotate %111 by %c127_i32_50 dim 1 : vector<48x128xf32>, i32 -> vector<48x128xf32>
    %c18 = arith.constant 18 : index
    %132 = memref.load %arg1[%c18] : memref<98xf32, #tpu.memory_space<smem>>
    %133 = vector.broadcast %132 : f32 to vector<48x128xf32>
    %134 = arith.mulf %133, %131 : vector<48x128xf32>
    %135 = arith.addf %126, %134 : vector<48x128xf32>
    %c126_i32_51 = arith.constant 126 : i32
    %136 = tpu.dynamic_rotate %111 by %c126_i32_51 dim 1 : vector<48x128xf32>, i32 -> vector<48x128xf32>
    %c19 = arith.constant 19 : index
    %137 = memref.load %arg1[%c19] : memref<98xf32, #tpu.memory_space<smem>>
    %138 = vector.broadcast %137 : f32 to vector<48x128xf32>
    %139 = arith.mulf %138, %136 : vector<48x128xf32>
    %140 = arith.addf %130, %139 : vector<48x128xf32>
    %c125_i32_52 = arith.constant 125 : i32
    %141 = tpu.dynamic_rotate %111 by %c125_i32_52 dim 1 : vector<48x128xf32>, i32 -> vector<48x128xf32>
    %c20 = arith.constant 20 : index
    %142 = memref.load %arg1[%c20] : memref<98xf32, #tpu.memory_space<smem>>
    %143 = vector.broadcast %142 : f32 to vector<48x128xf32>
    %144 = arith.mulf %143, %141 : vector<48x128xf32>
    %145 = arith.addf %135, %144 : vector<48x128xf32>
    %c0_53 = arith.constant 0 : index
    %c8_54 = arith.constant 8 : index
    %c0_55 = arith.constant 0 : index
    %146 = vector.load %arg4[%c0_53, %c8_54, %c0_55] : memref<2x64x128xf32, #tpu.memory_space<vmem>>, vector<1x48x128xf32>
    %147 = vector.shape_cast %146 : vector<1x48x128xf32> to vector<48x128xf32>
    %c3_i32_56 = arith.constant 3 : i32
    %148 = tpu.dynamic_rotate %147 by %c3_i32_56 dim 1 : vector<48x128xf32>, i32 -> vector<48x128xf32>
    %c21 = arith.constant 21 : index
    %149 = memref.load %arg1[%c21] : memref<98xf32, #tpu.memory_space<smem>>
    %150 = vector.broadcast %149 : f32 to vector<48x128xf32>
    %151 = arith.mulf %150, %148 : vector<48x128xf32>
    %152 = arith.addf %140, %151 : vector<48x128xf32>
    %c2_i32_57 = arith.constant 2 : i32
    %153 = tpu.dynamic_rotate %147 by %c2_i32_57 dim 1 : vector<48x128xf32>, i32 -> vector<48x128xf32>
    %c22 = arith.constant 22 : index
    %154 = memref.load %arg1[%c22] : memref<98xf32, #tpu.memory_space<smem>>
    %155 = vector.broadcast %154 : f32 to vector<48x128xf32>
    %156 = arith.mulf %155, %153 : vector<48x128xf32>
    %157 = arith.addf %145, %156 : vector<48x128xf32>
    %c1_i32_58 = arith.constant 1 : i32
    %158 = tpu.dynamic_rotate %147 by %c1_i32_58 dim 1 : vector<48x128xf32>, i32 -> vector<48x128xf32>
    %c23 = arith.constant 23 : index
    %159 = memref.load %arg1[%c23] : memref<98xf32, #tpu.memory_space<smem>>
    %160 = vector.broadcast %159 : f32 to vector<48x128xf32>
    %161 = arith.mulf %160, %158 : vector<48x128xf32>
    %162 = arith.addf %152, %161 : vector<48x128xf32>
    %c24 = arith.constant 24 : index
    %163 = memref.load %arg1[%c24] : memref<98xf32, #tpu.memory_space<smem>>
    %164 = vector.broadcast %163 : f32 to vector<48x128xf32>
    %165 = arith.mulf %164, %147 : vector<48x128xf32>
    %166 = arith.addf %157, %165 : vector<48x128xf32>
    %c127_i32_59 = arith.constant 127 : i32
    %167 = tpu.dynamic_rotate %147 by %c127_i32_59 dim 1 : vector<48x128xf32>, i32 -> vector<48x128xf32>
    %c25 = arith.constant 25 : index
    %168 = memref.load %arg1[%c25] : memref<98xf32, #tpu.memory_space<smem>>
    %169 = vector.broadcast %168 : f32 to vector<48x128xf32>
    %170 = arith.mulf %169, %167 : vector<48x128xf32>
    %171 = arith.addf %162, %170 : vector<48x128xf32>
    %c126_i32_60 = arith.constant 126 : i32
    %172 = tpu.dynamic_rotate %147 by %c126_i32_60 dim 1 : vector<48x128xf32>, i32 -> vector<48x128xf32>
    %c26 = arith.constant 26 : index
    %173 = memref.load %arg1[%c26] : memref<98xf32, #tpu.memory_space<smem>>
    %174 = vector.broadcast %173 : f32 to vector<48x128xf32>
    %175 = arith.mulf %174, %172 : vector<48x128xf32>
    %176 = arith.addf %166, %175 : vector<48x128xf32>
    %c125_i32_61 = arith.constant 125 : i32
    %177 = tpu.dynamic_rotate %147 by %c125_i32_61 dim 1 : vector<48x128xf32>, i32 -> vector<48x128xf32>
    %c27 = arith.constant 27 : index
    %178 = memref.load %arg1[%c27] : memref<98xf32, #tpu.memory_space<smem>>
    %179 = vector.broadcast %178 : f32 to vector<48x128xf32>
    %180 = arith.mulf %179, %177 : vector<48x128xf32>
    %181 = arith.addf %171, %180 : vector<48x128xf32>
    %c0_62 = arith.constant 0 : index
    %c9_63 = arith.constant 9 : index
    %c0_64 = arith.constant 0 : index
    %182 = vector.load %arg4[%c0_62, %c9_63, %c0_64] : memref<2x64x128xf32, #tpu.memory_space<vmem>>, vector<1x48x128xf32>
    %183 = vector.shape_cast %182 : vector<1x48x128xf32> to vector<48x128xf32>
    %c3_i32_65 = arith.constant 3 : i32
    %184 = tpu.dynamic_rotate %183 by %c3_i32_65 dim 1 : vector<48x128xf32>, i32 -> vector<48x128xf32>
    %c28 = arith.constant 28 : index
    %185 = memref.load %arg1[%c28] : memref<98xf32, #tpu.memory_space<smem>>
    %186 = vector.broadcast %185 : f32 to vector<48x128xf32>
    %187 = arith.mulf %186, %184 : vector<48x128xf32>
    %188 = arith.addf %176, %187 : vector<48x128xf32>
    %c2_i32_66 = arith.constant 2 : i32
    %189 = tpu.dynamic_rotate %183 by %c2_i32_66 dim 1 : vector<48x128xf32>, i32 -> vector<48x128xf32>
    %c29 = arith.constant 29 : index
    %190 = memref.load %arg1[%c29] : memref<98xf32, #tpu.memory_space<smem>>
    %191 = vector.broadcast %190 : f32 to vector<48x128xf32>
    %192 = arith.mulf %191, %189 : vector<48x128xf32>
    %193 = arith.addf %181, %192 : vector<48x128xf32>
    %c1_i32_67 = arith.constant 1 : i32
    %194 = tpu.dynamic_rotate %183 by %c1_i32_67 dim 1 : vector<48x128xf32>, i32 -> vector<48x128xf32>
    %c30 = arith.constant 30 : index
    %195 = memref.load %arg1[%c30] : memref<98xf32, #tpu.memory_space<smem>>
    %196 = vector.broadcast %195 : f32 to vector<48x128xf32>
    %197 = arith.mulf %196, %194 : vector<48x128xf32>
    %198 = arith.addf %188, %197 : vector<48x128xf32>
    %c31 = arith.constant 31 : index
    %199 = memref.load %arg1[%c31] : memref<98xf32, #tpu.memory_space<smem>>
    %200 = vector.broadcast %199 : f32 to vector<48x128xf32>
    %201 = arith.mulf %200, %183 : vector<48x128xf32>
    %202 = arith.addf %193, %201 : vector<48x128xf32>
    %c127_i32_68 = arith.constant 127 : i32
    %203 = tpu.dynamic_rotate %183 by %c127_i32_68 dim 1 : vector<48x128xf32>, i32 -> vector<48x128xf32>
    %c32_69 = arith.constant 32 : index
    %204 = memref.load %arg1[%c32_69] : memref<98xf32, #tpu.memory_space<smem>>
    %205 = vector.broadcast %204 : f32 to vector<48x128xf32>
    %206 = arith.mulf %205, %203 : vector<48x128xf32>
    %207 = arith.addf %198, %206 : vector<48x128xf32>
    %c126_i32_70 = arith.constant 126 : i32
    %208 = tpu.dynamic_rotate %183 by %c126_i32_70 dim 1 : vector<48x128xf32>, i32 -> vector<48x128xf32>
    %c33 = arith.constant 33 : index
    %209 = memref.load %arg1[%c33] : memref<98xf32, #tpu.memory_space<smem>>
    %210 = vector.broadcast %209 : f32 to vector<48x128xf32>
    %211 = arith.mulf %210, %208 : vector<48x128xf32>
    %212 = arith.addf %202, %211 : vector<48x128xf32>
    %c125_i32_71 = arith.constant 125 : i32
    %213 = tpu.dynamic_rotate %183 by %c125_i32_71 dim 1 : vector<48x128xf32>, i32 -> vector<48x128xf32>
    %c34 = arith.constant 34 : index
    %214 = memref.load %arg1[%c34] : memref<98xf32, #tpu.memory_space<smem>>
    %215 = vector.broadcast %214 : f32 to vector<48x128xf32>
    %216 = arith.mulf %215, %213 : vector<48x128xf32>
    %217 = arith.addf %207, %216 : vector<48x128xf32>
    %c0_72 = arith.constant 0 : index
    %c10_73 = arith.constant 10 : index
    %c0_74 = arith.constant 0 : index
    %218 = vector.load %arg4[%c0_72, %c10_73, %c0_74] : memref<2x64x128xf32, #tpu.memory_space<vmem>>, vector<1x48x128xf32>
    %219 = vector.shape_cast %218 : vector<1x48x128xf32> to vector<48x128xf32>
    %c3_i32_75 = arith.constant 3 : i32
    %220 = tpu.dynamic_rotate %219 by %c3_i32_75 dim 1 : vector<48x128xf32>, i32 -> vector<48x128xf32>
    %c35 = arith.constant 35 : index
    %221 = memref.load %arg1[%c35] : memref<98xf32, #tpu.memory_space<smem>>
    %222 = vector.broadcast %221 : f32 to vector<48x128xf32>
    %223 = arith.mulf %222, %220 : vector<48x128xf32>
    %224 = arith.addf %212, %223 : vector<48x128xf32>
    %c2_i32_76 = arith.constant 2 : i32
    %225 = tpu.dynamic_rotate %219 by %c2_i32_76 dim 1 : vector<48x128xf32>, i32 -> vector<48x128xf32>
    %c36 = arith.constant 36 : index
    %226 = memref.load %arg1[%c36] : memref<98xf32, #tpu.memory_space<smem>>
    %227 = vector.broadcast %226 : f32 to vector<48x128xf32>
    %228 = arith.mulf %227, %225 : vector<48x128xf32>
    %229 = arith.addf %217, %228 : vector<48x128xf32>
    %c1_i32_77 = arith.constant 1 : i32
    %230 = tpu.dynamic_rotate %219 by %c1_i32_77 dim 1 : vector<48x128xf32>, i32 -> vector<48x128xf32>
    %c37 = arith.constant 37 : index
    %231 = memref.load %arg1[%c37] : memref<98xf32, #tpu.memory_space<smem>>
    %232 = vector.broadcast %231 : f32 to vector<48x128xf32>
    %233 = arith.mulf %232, %230 : vector<48x128xf32>
    %234 = arith.addf %224, %233 : vector<48x128xf32>
    %c38 = arith.constant 38 : index
    %235 = memref.load %arg1[%c38] : memref<98xf32, #tpu.memory_space<smem>>
    %236 = vector.broadcast %235 : f32 to vector<48x128xf32>
    %237 = arith.mulf %236, %219 : vector<48x128xf32>
    %238 = arith.addf %229, %237 : vector<48x128xf32>
    %c127_i32_78 = arith.constant 127 : i32
    %239 = tpu.dynamic_rotate %219 by %c127_i32_78 dim 1 : vector<48x128xf32>, i32 -> vector<48x128xf32>
    %c39 = arith.constant 39 : index
    %240 = memref.load %arg1[%c39] : memref<98xf32, #tpu.memory_space<smem>>
    %241 = vector.broadcast %240 : f32 to vector<48x128xf32>
    %242 = arith.mulf %241, %239 : vector<48x128xf32>
    %243 = arith.addf %234, %242 : vector<48x128xf32>
    %c126_i32_79 = arith.constant 126 : i32
    %244 = tpu.dynamic_rotate %219 by %c126_i32_79 dim 1 : vector<48x128xf32>, i32 -> vector<48x128xf32>
    %c40 = arith.constant 40 : index
    %245 = memref.load %arg1[%c40] : memref<98xf32, #tpu.memory_space<smem>>
    %246 = vector.broadcast %245 : f32 to vector<48x128xf32>
    %247 = arith.mulf %246, %244 : vector<48x128xf32>
    %248 = arith.addf %238, %247 : vector<48x128xf32>
    %c125_i32_80 = arith.constant 125 : i32
    %249 = tpu.dynamic_rotate %219 by %c125_i32_80 dim 1 : vector<48x128xf32>, i32 -> vector<48x128xf32>
    %c41 = arith.constant 41 : index
    %250 = memref.load %arg1[%c41] : memref<98xf32, #tpu.memory_space<smem>>
    %251 = vector.broadcast %250 : f32 to vector<48x128xf32>
    %252 = arith.mulf %251, %249 : vector<48x128xf32>
    %253 = arith.addf %243, %252 : vector<48x128xf32>
    %c0_81 = arith.constant 0 : index
    %c11_82 = arith.constant 11 : index
    %c0_83 = arith.constant 0 : index
    %254 = vector.load %arg4[%c0_81, %c11_82, %c0_83] : memref<2x64x128xf32, #tpu.memory_space<vmem>>, vector<1x48x128xf32>
    %255 = vector.shape_cast %254 : vector<1x48x128xf32> to vector<48x128xf32>
    %c3_i32_84 = arith.constant 3 : i32
    %256 = tpu.dynamic_rotate %255 by %c3_i32_84 dim 1 : vector<48x128xf32>, i32 -> vector<48x128xf32>
    %c42 = arith.constant 42 : index
    %257 = memref.load %arg1[%c42] : memref<98xf32, #tpu.memory_space<smem>>
    %258 = vector.broadcast %257 : f32 to vector<48x128xf32>
    %259 = arith.mulf %258, %256 : vector<48x128xf32>
    %260 = arith.addf %248, %259 : vector<48x128xf32>
    %c2_i32_85 = arith.constant 2 : i32
    %261 = tpu.dynamic_rotate %255 by %c2_i32_85 dim 1 : vector<48x128xf32>, i32 -> vector<48x128xf32>
    %c43 = arith.constant 43 : index
    %262 = memref.load %arg1[%c43] : memref<98xf32, #tpu.memory_space<smem>>
    %263 = vector.broadcast %262 : f32 to vector<48x128xf32>
    %264 = arith.mulf %263, %261 : vector<48x128xf32>
    %265 = arith.addf %253, %264 : vector<48x128xf32>
    %c1_i32_86 = arith.constant 1 : i32
    %266 = tpu.dynamic_rotate %255 by %c1_i32_86 dim 1 : vector<48x128xf32>, i32 -> vector<48x128xf32>
    %c44 = arith.constant 44 : index
    %267 = memref.load %arg1[%c44] : memref<98xf32, #tpu.memory_space<smem>>
    %268 = vector.broadcast %267 : f32 to vector<48x128xf32>
    %269 = arith.mulf %268, %266 : vector<48x128xf32>
    %270 = arith.addf %260, %269 : vector<48x128xf32>
    %c45 = arith.constant 45 : index
    %271 = memref.load %arg1[%c45] : memref<98xf32, #tpu.memory_space<smem>>
    %272 = vector.broadcast %271 : f32 to vector<48x128xf32>
    %273 = arith.mulf %272, %255 : vector<48x128xf32>
    %274 = arith.addf %265, %273 : vector<48x128xf32>
    %c127_i32_87 = arith.constant 127 : i32
    %275 = tpu.dynamic_rotate %255 by %c127_i32_87 dim 1 : vector<48x128xf32>, i32 -> vector<48x128xf32>
    %c46 = arith.constant 46 : index
    %276 = memref.load %arg1[%c46] : memref<98xf32, #tpu.memory_space<smem>>
    %277 = vector.broadcast %276 : f32 to vector<48x128xf32>
    %278 = arith.mulf %277, %275 : vector<48x128xf32>
    %279 = arith.addf %270, %278 : vector<48x128xf32>
    %c126_i32_88 = arith.constant 126 : i32
    %280 = tpu.dynamic_rotate %255 by %c126_i32_88 dim 1 : vector<48x128xf32>, i32 -> vector<48x128xf32>
    %c47 = arith.constant 47 : index
    %281 = memref.load %arg1[%c47] : memref<98xf32, #tpu.memory_space<smem>>
    %282 = vector.broadcast %281 : f32 to vector<48x128xf32>
    %283 = arith.mulf %282, %280 : vector<48x128xf32>
    %284 = arith.addf %274, %283 : vector<48x128xf32>
    %c125_i32_89 = arith.constant 125 : i32
    %285 = tpu.dynamic_rotate %255 by %c125_i32_89 dim 1 : vector<48x128xf32>, i32 -> vector<48x128xf32>
    %c48 = arith.constant 48 : index
    %286 = memref.load %arg1[%c48] : memref<98xf32, #tpu.memory_space<smem>>
    %287 = vector.broadcast %286 : f32 to vector<48x128xf32>
    %288 = arith.mulf %287, %285 : vector<48x128xf32>
    %289 = arith.addf %279, %288 : vector<48x128xf32>
    %c1_90 = arith.constant 1 : index
    %c5_91 = arith.constant 5 : index
    %c0_92 = arith.constant 0 : index
    %290 = vector.load %arg4[%c1_90, %c5_91, %c0_92] : memref<2x64x128xf32, #tpu.memory_space<vmem>>, vector<1x48x128xf32>
    %291 = vector.shape_cast %290 : vector<1x48x128xf32> to vector<48x128xf32>
    %c3_i32_93 = arith.constant 3 : i32
    %292 = tpu.dynamic_rotate %291 by %c3_i32_93 dim 1 : vector<48x128xf32>, i32 -> vector<48x128xf32>
    %c49 = arith.constant 49 : index
    %293 = memref.load %arg1[%c49] : memref<98xf32, #tpu.memory_space<smem>>
    %294 = vector.broadcast %293 : f32 to vector<48x128xf32>
    %295 = arith.mulf %294, %292 : vector<48x128xf32>
    %296 = arith.addf %284, %295 : vector<48x128xf32>
    %c2_i32_94 = arith.constant 2 : i32
    %297 = tpu.dynamic_rotate %291 by %c2_i32_94 dim 1 : vector<48x128xf32>, i32 -> vector<48x128xf32>
    %c50 = arith.constant 50 : index
    %298 = memref.load %arg1[%c50] : memref<98xf32, #tpu.memory_space<smem>>
    %299 = vector.broadcast %298 : f32 to vector<48x128xf32>
    %300 = arith.mulf %299, %297 : vector<48x128xf32>
    %301 = arith.addf %289, %300 : vector<48x128xf32>
    %c1_i32_95 = arith.constant 1 : i32
    %302 = tpu.dynamic_rotate %291 by %c1_i32_95 dim 1 : vector<48x128xf32>, i32 -> vector<48x128xf32>
    %c51 = arith.constant 51 : index
    %303 = memref.load %arg1[%c51] : memref<98xf32, #tpu.memory_space<smem>>
    %304 = vector.broadcast %303 : f32 to vector<48x128xf32>
    %305 = arith.mulf %304, %302 : vector<48x128xf32>
    %306 = arith.addf %296, %305 : vector<48x128xf32>
    %c52 = arith.constant 52 : index
    %307 = memref.load %arg1[%c52] : memref<98xf32, #tpu.memory_space<smem>>
    %308 = vector.broadcast %307 : f32 to vector<48x128xf32>
    %309 = arith.mulf %308, %291 : vector<48x128xf32>
    %310 = arith.addf %301, %309 : vector<48x128xf32>
    %c127_i32_96 = arith.constant 127 : i32
    %311 = tpu.dynamic_rotate %291 by %c127_i32_96 dim 1 : vector<48x128xf32>, i32 -> vector<48x128xf32>
    %c53 = arith.constant 53 : index
    %312 = memref.load %arg1[%c53] : memref<98xf32, #tpu.memory_space<smem>>
    %313 = vector.broadcast %312 : f32 to vector<48x128xf32>
    %314 = arith.mulf %313, %311 : vector<48x128xf32>
    %315 = arith.addf %306, %314 : vector<48x128xf32>
    %c126_i32_97 = arith.constant 126 : i32
    %316 = tpu.dynamic_rotate %291 by %c126_i32_97 dim 1 : vector<48x128xf32>, i32 -> vector<48x128xf32>
    %c54 = arith.constant 54 : index
    %317 = memref.load %arg1[%c54] : memref<98xf32, #tpu.memory_space<smem>>
    %318 = vector.broadcast %317 : f32 to vector<48x128xf32>
    %319 = arith.mulf %318, %316 : vector<48x128xf32>
    %320 = arith.addf %310, %319 : vector<48x128xf32>
    %c125_i32_98 = arith.constant 125 : i32
    %321 = tpu.dynamic_rotate %291 by %c125_i32_98 dim 1 : vector<48x128xf32>, i32 -> vector<48x128xf32>
    %c55 = arith.constant 55 : index
    %322 = memref.load %arg1[%c55] : memref<98xf32, #tpu.memory_space<smem>>
    %323 = vector.broadcast %322 : f32 to vector<48x128xf32>
    %324 = arith.mulf %323, %321 : vector<48x128xf32>
    %325 = arith.addf %315, %324 : vector<48x128xf32>
    %c1_99 = arith.constant 1 : index
    %c6_100 = arith.constant 6 : index
    %c0_101 = arith.constant 0 : index
    %326 = vector.load %arg4[%c1_99, %c6_100, %c0_101] : memref<2x64x128xf32, #tpu.memory_space<vmem>>, vector<1x48x128xf32>
    %327 = vector.shape_cast %326 : vector<1x48x128xf32> to vector<48x128xf32>
    %c3_i32_102 = arith.constant 3 : i32
    %328 = tpu.dynamic_rotate %327 by %c3_i32_102 dim 1 : vector<48x128xf32>, i32 -> vector<48x128xf32>
    %c56 = arith.constant 56 : index
    %329 = memref.load %arg1[%c56] : memref<98xf32, #tpu.memory_space<smem>>
    %330 = vector.broadcast %329 : f32 to vector<48x128xf32>
    %331 = arith.mulf %330, %328 : vector<48x128xf32>
    %332 = arith.addf %320, %331 : vector<48x128xf32>
    %c2_i32_103 = arith.constant 2 : i32
    %333 = tpu.dynamic_rotate %327 by %c2_i32_103 dim 1 : vector<48x128xf32>, i32 -> vector<48x128xf32>
    %c57 = arith.constant 57 : index
    %334 = memref.load %arg1[%c57] : memref<98xf32, #tpu.memory_space<smem>>
    %335 = vector.broadcast %334 : f32 to vector<48x128xf32>
    %336 = arith.mulf %335, %333 : vector<48x128xf32>
    %337 = arith.addf %325, %336 : vector<48x128xf32>
    %c1_i32_104 = arith.constant 1 : i32
    %338 = tpu.dynamic_rotate %327 by %c1_i32_104 dim 1 : vector<48x128xf32>, i32 -> vector<48x128xf32>
    %c58 = arith.constant 58 : index
    %339 = memref.load %arg1[%c58] : memref<98xf32, #tpu.memory_space<smem>>
    %340 = vector.broadcast %339 : f32 to vector<48x128xf32>
    %341 = arith.mulf %340, %338 : vector<48x128xf32>
    %342 = arith.addf %332, %341 : vector<48x128xf32>
    %c59 = arith.constant 59 : index
    %343 = memref.load %arg1[%c59] : memref<98xf32, #tpu.memory_space<smem>>
    %344 = vector.broadcast %343 : f32 to vector<48x128xf32>
    %345 = arith.mulf %344, %327 : vector<48x128xf32>
    %346 = arith.addf %337, %345 : vector<48x128xf32>
    %c127_i32_105 = arith.constant 127 : i32
    %347 = tpu.dynamic_rotate %327 by %c127_i32_105 dim 1 : vector<48x128xf32>, i32 -> vector<48x128xf32>
    %c60 = arith.constant 60 : index
    %348 = memref.load %arg1[%c60] : memref<98xf32, #tpu.memory_space<smem>>
    %349 = vector.broadcast %348 : f32 to vector<48x128xf32>
    %350 = arith.mulf %349, %347 : vector<48x128xf32>
    %351 = arith.addf %342, %350 : vector<48x128xf32>
    %c126_i32_106 = arith.constant 126 : i32
    %352 = tpu.dynamic_rotate %327 by %c126_i32_106 dim 1 : vector<48x128xf32>, i32 -> vector<48x128xf32>
    %c61 = arith.constant 61 : index
    %353 = memref.load %arg1[%c61] : memref<98xf32, #tpu.memory_space<smem>>
    %354 = vector.broadcast %353 : f32 to vector<48x128xf32>
    %355 = arith.mulf %354, %352 : vector<48x128xf32>
    %356 = arith.addf %346, %355 : vector<48x128xf32>
    %c125_i32_107 = arith.constant 125 : i32
    %357 = tpu.dynamic_rotate %327 by %c125_i32_107 dim 1 : vector<48x128xf32>, i32 -> vector<48x128xf32>
    %c62 = arith.constant 62 : index
    %358 = memref.load %arg1[%c62] : memref<98xf32, #tpu.memory_space<smem>>
    %359 = vector.broadcast %358 : f32 to vector<48x128xf32>
    %360 = arith.mulf %359, %357 : vector<48x128xf32>
    %361 = arith.addf %351, %360 : vector<48x128xf32>
    %c1_108 = arith.constant 1 : index
    %c7_109 = arith.constant 7 : index
    %c0_110 = arith.constant 0 : index
    %362 = vector.load %arg4[%c1_108, %c7_109, %c0_110] : memref<2x64x128xf32, #tpu.memory_space<vmem>>, vector<1x48x128xf32>
    %363 = vector.shape_cast %362 : vector<1x48x128xf32> to vector<48x128xf32>
    %c3_i32_111 = arith.constant 3 : i32
    %364 = tpu.dynamic_rotate %363 by %c3_i32_111 dim 1 : vector<48x128xf32>, i32 -> vector<48x128xf32>
    %c63 = arith.constant 63 : index
    %365 = memref.load %arg1[%c63] : memref<98xf32, #tpu.memory_space<smem>>
    %366 = vector.broadcast %365 : f32 to vector<48x128xf32>
    %367 = arith.mulf %366, %364 : vector<48x128xf32>
    %368 = arith.addf %356, %367 : vector<48x128xf32>
    %c2_i32_112 = arith.constant 2 : i32
    %369 = tpu.dynamic_rotate %363 by %c2_i32_112 dim 1 : vector<48x128xf32>, i32 -> vector<48x128xf32>
    %c64 = arith.constant 64 : index
    %370 = memref.load %arg1[%c64] : memref<98xf32, #tpu.memory_space<smem>>
    %371 = vector.broadcast %370 : f32 to vector<48x128xf32>
    %372 = arith.mulf %371, %369 : vector<48x128xf32>
    %373 = arith.addf %361, %372 : vector<48x128xf32>
    %c1_i32_113 = arith.constant 1 : i32
    %374 = tpu.dynamic_rotate %363 by %c1_i32_113 dim 1 : vector<48x128xf32>, i32 -> vector<48x128xf32>
    %c65 = arith.constant 65 : index
    %375 = memref.load %arg1[%c65] : memref<98xf32, #tpu.memory_space<smem>>
    %376 = vector.broadcast %375 : f32 to vector<48x128xf32>
    %377 = arith.mulf %376, %374 : vector<48x128xf32>
    %378 = arith.addf %368, %377 : vector<48x128xf32>
    %c66 = arith.constant 66 : index
    %379 = memref.load %arg1[%c66] : memref<98xf32, #tpu.memory_space<smem>>
    %380 = vector.broadcast %379 : f32 to vector<48x128xf32>
    %381 = arith.mulf %380, %363 : vector<48x128xf32>
    %382 = arith.addf %373, %381 : vector<48x128xf32>
    %c127_i32_114 = arith.constant 127 : i32
    %383 = tpu.dynamic_rotate %363 by %c127_i32_114 dim 1 : vector<48x128xf32>, i32 -> vector<48x128xf32>
    %c67 = arith.constant 67 : index
    %384 = memref.load %arg1[%c67] : memref<98xf32, #tpu.memory_space<smem>>
    %385 = vector.broadcast %384 : f32 to vector<48x128xf32>
    %386 = arith.mulf %385, %383 : vector<48x128xf32>
    %387 = arith.addf %378, %386 : vector<48x128xf32>
    %c126_i32_115 = arith.constant 126 : i32
    %388 = tpu.dynamic_rotate %363 by %c126_i32_115 dim 1 : vector<48x128xf32>, i32 -> vector<48x128xf32>
    %c68 = arith.constant 68 : index
    %389 = memref.load %arg1[%c68] : memref<98xf32, #tpu.memory_space<smem>>
    %390 = vector.broadcast %389 : f32 to vector<48x128xf32>
    %391 = arith.mulf %390, %388 : vector<48x128xf32>
    %392 = arith.addf %382, %391 : vector<48x128xf32>
    %c125_i32_116 = arith.constant 125 : i32
    %393 = tpu.dynamic_rotate %363 by %c125_i32_116 dim 1 : vector<48x128xf32>, i32 -> vector<48x128xf32>
    %c69 = arith.constant 69 : index
    %394 = memref.load %arg1[%c69] : memref<98xf32, #tpu.memory_space<smem>>
    %395 = vector.broadcast %394 : f32 to vector<48x128xf32>
    %396 = arith.mulf %395, %393 : vector<48x128xf32>
    %397 = arith.addf %387, %396 : vector<48x128xf32>
    %c1_117 = arith.constant 1 : index
    %c8_118 = arith.constant 8 : index
    %c0_119 = arith.constant 0 : index
    %398 = vector.load %arg4[%c1_117, %c8_118, %c0_119] : memref<2x64x128xf32, #tpu.memory_space<vmem>>, vector<1x48x128xf32>
    %399 = vector.shape_cast %398 : vector<1x48x128xf32> to vector<48x128xf32>
    %c3_i32_120 = arith.constant 3 : i32
    %400 = tpu.dynamic_rotate %399 by %c3_i32_120 dim 1 : vector<48x128xf32>, i32 -> vector<48x128xf32>
    %c70 = arith.constant 70 : index
    %401 = memref.load %arg1[%c70] : memref<98xf32, #tpu.memory_space<smem>>
    %402 = vector.broadcast %401 : f32 to vector<48x128xf32>
    %403 = arith.mulf %402, %400 : vector<48x128xf32>
    %404 = arith.addf %392, %403 : vector<48x128xf32>
    %c2_i32_121 = arith.constant 2 : i32
    %405 = tpu.dynamic_rotate %399 by %c2_i32_121 dim 1 : vector<48x128xf32>, i32 -> vector<48x128xf32>
    %c71 = arith.constant 71 : index
    %406 = memref.load %arg1[%c71] : memref<98xf32, #tpu.memory_space<smem>>
    %407 = vector.broadcast %406 : f32 to vector<48x128xf32>
    %408 = arith.mulf %407, %405 : vector<48x128xf32>
    %409 = arith.addf %397, %408 : vector<48x128xf32>
    %c1_i32_122 = arith.constant 1 : i32
    %410 = tpu.dynamic_rotate %399 by %c1_i32_122 dim 1 : vector<48x128xf32>, i32 -> vector<48x128xf32>
    %c72 = arith.constant 72 : index
    %411 = memref.load %arg1[%c72] : memref<98xf32, #tpu.memory_space<smem>>
    %412 = vector.broadcast %411 : f32 to vector<48x128xf32>
    %413 = arith.mulf %412, %410 : vector<48x128xf32>
    %414 = arith.addf %404, %413 : vector<48x128xf32>
    %c73 = arith.constant 73 : index
    %415 = memref.load %arg1[%c73] : memref<98xf32, #tpu.memory_space<smem>>
    %416 = vector.broadcast %415 : f32 to vector<48x128xf32>
    %417 = arith.mulf %416, %399 : vector<48x128xf32>
    %418 = arith.addf %409, %417 : vector<48x128xf32>
    %c127_i32_123 = arith.constant 127 : i32
    %419 = tpu.dynamic_rotate %399 by %c127_i32_123 dim 1 : vector<48x128xf32>, i32 -> vector<48x128xf32>
    %c74 = arith.constant 74 : index
    %420 = memref.load %arg1[%c74] : memref<98xf32, #tpu.memory_space<smem>>
    %421 = vector.broadcast %420 : f32 to vector<48x128xf32>
    %422 = arith.mulf %421, %419 : vector<48x128xf32>
    %423 = arith.addf %414, %422 : vector<48x128xf32>
    %c126_i32_124 = arith.constant 126 : i32
    %424 = tpu.dynamic_rotate %399 by %c126_i32_124 dim 1 : vector<48x128xf32>, i32 -> vector<48x128xf32>
    %c75 = arith.constant 75 : index
    %425 = memref.load %arg1[%c75] : memref<98xf32, #tpu.memory_space<smem>>
    %426 = vector.broadcast %425 : f32 to vector<48x128xf32>
    %427 = arith.mulf %426, %424 : vector<48x128xf32>
    %428 = arith.addf %418, %427 : vector<48x128xf32>
    %c125_i32_125 = arith.constant 125 : i32
    %429 = tpu.dynamic_rotate %399 by %c125_i32_125 dim 1 : vector<48x128xf32>, i32 -> vector<48x128xf32>
    %c76 = arith.constant 76 : index
    %430 = memref.load %arg1[%c76] : memref<98xf32, #tpu.memory_space<smem>>
    %431 = vector.broadcast %430 : f32 to vector<48x128xf32>
    %432 = arith.mulf %431, %429 : vector<48x128xf32>
    %433 = arith.addf %423, %432 : vector<48x128xf32>
    %c1_126 = arith.constant 1 : index
    %c9_127 = arith.constant 9 : index
    %c0_128 = arith.constant 0 : index
    %434 = vector.load %arg4[%c1_126, %c9_127, %c0_128] : memref<2x64x128xf32, #tpu.memory_space<vmem>>, vector<1x48x128xf32>
    %435 = vector.shape_cast %434 : vector<1x48x128xf32> to vector<48x128xf32>
    %c3_i32_129 = arith.constant 3 : i32
    %436 = tpu.dynamic_rotate %435 by %c3_i32_129 dim 1 : vector<48x128xf32>, i32 -> vector<48x128xf32>
    %c77 = arith.constant 77 : index
    %437 = memref.load %arg1[%c77] : memref<98xf32, #tpu.memory_space<smem>>
    %438 = vector.broadcast %437 : f32 to vector<48x128xf32>
    %439 = arith.mulf %438, %436 : vector<48x128xf32>
    %440 = arith.addf %428, %439 : vector<48x128xf32>
    %c2_i32_130 = arith.constant 2 : i32
    %441 = tpu.dynamic_rotate %435 by %c2_i32_130 dim 1 : vector<48x128xf32>, i32 -> vector<48x128xf32>
    %c78 = arith.constant 78 : index
    %442 = memref.load %arg1[%c78] : memref<98xf32, #tpu.memory_space<smem>>
    %443 = vector.broadcast %442 : f32 to vector<48x128xf32>
    %444 = arith.mulf %443, %441 : vector<48x128xf32>
    %445 = arith.addf %433, %444 : vector<48x128xf32>
    %c1_i32_131 = arith.constant 1 : i32
    %446 = tpu.dynamic_rotate %435 by %c1_i32_131 dim 1 : vector<48x128xf32>, i32 -> vector<48x128xf32>
    %c79 = arith.constant 79 : index
    %447 = memref.load %arg1[%c79] : memref<98xf32, #tpu.memory_space<smem>>
    %448 = vector.broadcast %447 : f32 to vector<48x128xf32>
    %449 = arith.mulf %448, %446 : vector<48x128xf32>
    %450 = arith.addf %440, %449 : vector<48x128xf32>
    %c80 = arith.constant 80 : index
    %451 = memref.load %arg1[%c80] : memref<98xf32, #tpu.memory_space<smem>>
    %452 = vector.broadcast %451 : f32 to vector<48x128xf32>
    %453 = arith.mulf %452, %435 : vector<48x128xf32>
    %454 = arith.addf %445, %453 : vector<48x128xf32>
    %c127_i32_132 = arith.constant 127 : i32
    %455 = tpu.dynamic_rotate %435 by %c127_i32_132 dim 1 : vector<48x128xf32>, i32 -> vector<48x128xf32>
    %c81 = arith.constant 81 : index
    %456 = memref.load %arg1[%c81] : memref<98xf32, #tpu.memory_space<smem>>
    %457 = vector.broadcast %456 : f32 to vector<48x128xf32>
    %458 = arith.mulf %457, %455 : vector<48x128xf32>
    %459 = arith.addf %450, %458 : vector<48x128xf32>
    %c126_i32_133 = arith.constant 126 : i32
    %460 = tpu.dynamic_rotate %435 by %c126_i32_133 dim 1 : vector<48x128xf32>, i32 -> vector<48x128xf32>
    %c82 = arith.constant 82 : index
    %461 = memref.load %arg1[%c82] : memref<98xf32, #tpu.memory_space<smem>>
    %462 = vector.broadcast %461 : f32 to vector<48x128xf32>
    %463 = arith.mulf %462, %460 : vector<48x128xf32>
    %464 = arith.addf %454, %463 : vector<48x128xf32>
    %c125_i32_134 = arith.constant 125 : i32
    %465 = tpu.dynamic_rotate %435 by %c125_i32_134 dim 1 : vector<48x128xf32>, i32 -> vector<48x128xf32>
    %c83 = arith.constant 83 : index
    %466 = memref.load %arg1[%c83] : memref<98xf32, #tpu.memory_space<smem>>
    %467 = vector.broadcast %466 : f32 to vector<48x128xf32>
    %468 = arith.mulf %467, %465 : vector<48x128xf32>
    %469 = arith.addf %459, %468 : vector<48x128xf32>
    %c1_135 = arith.constant 1 : index
    %c10_136 = arith.constant 10 : index
    %c0_137 = arith.constant 0 : index
    %470 = vector.load %arg4[%c1_135, %c10_136, %c0_137] : memref<2x64x128xf32, #tpu.memory_space<vmem>>, vector<1x48x128xf32>
    %471 = vector.shape_cast %470 : vector<1x48x128xf32> to vector<48x128xf32>
    %c3_i32_138 = arith.constant 3 : i32
    %472 = tpu.dynamic_rotate %471 by %c3_i32_138 dim 1 : vector<48x128xf32>, i32 -> vector<48x128xf32>
    %c84 = arith.constant 84 : index
    %473 = memref.load %arg1[%c84] : memref<98xf32, #tpu.memory_space<smem>>
    %474 = vector.broadcast %473 : f32 to vector<48x128xf32>
    %475 = arith.mulf %474, %472 : vector<48x128xf32>
    %476 = arith.addf %464, %475 : vector<48x128xf32>
    %c2_i32_139 = arith.constant 2 : i32
    %477 = tpu.dynamic_rotate %471 by %c2_i32_139 dim 1 : vector<48x128xf32>, i32 -> vector<48x128xf32>
    %c85 = arith.constant 85 : index
    %478 = memref.load %arg1[%c85] : memref<98xf32, #tpu.memory_space<smem>>
    %479 = vector.broadcast %478 : f32 to vector<48x128xf32>
    %480 = arith.mulf %479, %477 : vector<48x128xf32>
    %481 = arith.addf %469, %480 : vector<48x128xf32>
    %c1_i32_140 = arith.constant 1 : i32
    %482 = tpu.dynamic_rotate %471 by %c1_i32_140 dim 1 : vector<48x128xf32>, i32 -> vector<48x128xf32>
    %c86 = arith.constant 86 : index
    %483 = memref.load %arg1[%c86] : memref<98xf32, #tpu.memory_space<smem>>
    %484 = vector.broadcast %483 : f32 to vector<48x128xf32>
    %485 = arith.mulf %484, %482 : vector<48x128xf32>
    %486 = arith.addf %476, %485 : vector<48x128xf32>
    %c87 = arith.constant 87 : index
    %487 = memref.load %arg1[%c87] : memref<98xf32, #tpu.memory_space<smem>>
    %488 = vector.broadcast %487 : f32 to vector<48x128xf32>
    %489 = arith.mulf %488, %471 : vector<48x128xf32>
    %490 = arith.addf %481, %489 : vector<48x128xf32>
    %c127_i32_141 = arith.constant 127 : i32
    %491 = tpu.dynamic_rotate %471 by %c127_i32_141 dim 1 : vector<48x128xf32>, i32 -> vector<48x128xf32>
    %c88 = arith.constant 88 : index
    %492 = memref.load %arg1[%c88] : memref<98xf32, #tpu.memory_space<smem>>
    %493 = vector.broadcast %492 : f32 to vector<48x128xf32>
    %494 = arith.mulf %493, %491 : vector<48x128xf32>
    %495 = arith.addf %486, %494 : vector<48x128xf32>
    %c126_i32_142 = arith.constant 126 : i32
    %496 = tpu.dynamic_rotate %471 by %c126_i32_142 dim 1 : vector<48x128xf32>, i32 -> vector<48x128xf32>
    %c89 = arith.constant 89 : index
    %497 = memref.load %arg1[%c89] : memref<98xf32, #tpu.memory_space<smem>>
    %498 = vector.broadcast %497 : f32 to vector<48x128xf32>
    %499 = arith.mulf %498, %496 : vector<48x128xf32>
    %500 = arith.addf %490, %499 : vector<48x128xf32>
    %c125_i32_143 = arith.constant 125 : i32
    %501 = tpu.dynamic_rotate %471 by %c125_i32_143 dim 1 : vector<48x128xf32>, i32 -> vector<48x128xf32>
    %c90 = arith.constant 90 : index
    %502 = memref.load %arg1[%c90] : memref<98xf32, #tpu.memory_space<smem>>
    %503 = vector.broadcast %502 : f32 to vector<48x128xf32>
    %504 = arith.mulf %503, %501 : vector<48x128xf32>
    %505 = arith.addf %495, %504 : vector<48x128xf32>
    %c1_144 = arith.constant 1 : index
    %c11_145 = arith.constant 11 : index
    %c0_146 = arith.constant 0 : index
    %506 = vector.load %arg4[%c1_144, %c11_145, %c0_146] : memref<2x64x128xf32, #tpu.memory_space<vmem>>, vector<1x48x128xf32>
    %507 = vector.shape_cast %506 : vector<1x48x128xf32> to vector<48x128xf32>
    %c3_i32_147 = arith.constant 3 : i32
    %508 = tpu.dynamic_rotate %507 by %c3_i32_147 dim 1 : vector<48x128xf32>, i32 -> vector<48x128xf32>
    %c91 = arith.constant 91 : index
    %509 = memref.load %arg1[%c91] : memref<98xf32, #tpu.memory_space<smem>>
    %510 = vector.broadcast %509 : f32 to vector<48x128xf32>
    %511 = arith.mulf %510, %508 : vector<48x128xf32>
    %512 = arith.addf %500, %511 : vector<48x128xf32>
    %c2_i32_148 = arith.constant 2 : i32
    %513 = tpu.dynamic_rotate %507 by %c2_i32_148 dim 1 : vector<48x128xf32>, i32 -> vector<48x128xf32>
    %c92 = arith.constant 92 : index
    %514 = memref.load %arg1[%c92] : memref<98xf32, #tpu.memory_space<smem>>
    %515 = vector.broadcast %514 : f32 to vector<48x128xf32>
    %516 = arith.mulf %515, %513 : vector<48x128xf32>
    %517 = arith.addf %505, %516 : vector<48x128xf32>
    %c1_i32_149 = arith.constant 1 : i32
    %518 = tpu.dynamic_rotate %507 by %c1_i32_149 dim 1 : vector<48x128xf32>, i32 -> vector<48x128xf32>
    %c93 = arith.constant 93 : index
    %519 = memref.load %arg1[%c93] : memref<98xf32, #tpu.memory_space<smem>>
    %520 = vector.broadcast %519 : f32 to vector<48x128xf32>
    %521 = arith.mulf %520, %518 : vector<48x128xf32>
    %522 = arith.addf %512, %521 : vector<48x128xf32>
    %c94 = arith.constant 94 : index
    %523 = memref.load %arg1[%c94] : memref<98xf32, #tpu.memory_space<smem>>
    %524 = vector.broadcast %523 : f32 to vector<48x128xf32>
    %525 = arith.mulf %524, %507 : vector<48x128xf32>
    %526 = arith.addf %517, %525 : vector<48x128xf32>
    %c127_i32_150 = arith.constant 127 : i32
    %527 = tpu.dynamic_rotate %507 by %c127_i32_150 dim 1 : vector<48x128xf32>, i32 -> vector<48x128xf32>
    %c95 = arith.constant 95 : index
    %528 = memref.load %arg1[%c95] : memref<98xf32, #tpu.memory_space<smem>>
    %529 = vector.broadcast %528 : f32 to vector<48x128xf32>
    %530 = arith.mulf %529, %527 : vector<48x128xf32>
    %531 = arith.addf %522, %530 : vector<48x128xf32>
    %c126_i32_151 = arith.constant 126 : i32
    %532 = tpu.dynamic_rotate %507 by %c126_i32_151 dim 1 : vector<48x128xf32>, i32 -> vector<48x128xf32>
    %c96 = arith.constant 96 : index
    %533 = memref.load %arg1[%c96] : memref<98xf32, #tpu.memory_space<smem>>
    %534 = vector.broadcast %533 : f32 to vector<48x128xf32>
    %535 = arith.mulf %534, %532 : vector<48x128xf32>
    %536 = arith.addf %526, %535 : vector<48x128xf32>
    %c125_i32_152 = arith.constant 125 : i32
    %537 = tpu.dynamic_rotate %507 by %c125_i32_152 dim 1 : vector<48x128xf32>, i32 -> vector<48x128xf32>
    %c97 = arith.constant 97 : index
    %538 = memref.load %arg1[%c97] : memref<98xf32, #tpu.memory_space<smem>>
    %539 = vector.broadcast %538 : f32 to vector<48x128xf32>
    %540 = arith.mulf %539, %537 : vector<48x128xf32>
    %541 = arith.addf %531, %540 : vector<48x128xf32>
    %542 = arith.addf %536, %541 : vector<48x128xf32>
    %543 = vector.extract_strided_slice %542 {offsets = [0, 0], sizes = [16, 128], strides = [1, 1]} : vector<48x128xf32> to vector<16x128xf32>
    %544 = arith.negf %543 : vector<16x128xf32>
    %545 = math.exp %544 : vector<16x128xf32>
    %cst_153 = arith.constant 1.000000e+00 : f32
    %546 = vector.broadcast %cst_153 : f32 to vector<16x128xf32>
    %547 = arith.addf %546, %545 : vector<16x128xf32>
    %548 = arith.divf %546, %547 : vector<16x128xf32>
    %c0_154 = arith.constant 0 : index
    %c0_155 = arith.constant 0 : index
    %c0_156 = arith.constant 0 : index
    %549 = vector.load %arg3[%c0_154, %c0_155, %c0_156] : memref<2x16x128xf32, #tpu.memory_space<vmem>>, vector<1x16x128xf32>
    %550 = vector.shape_cast %549 : vector<1x16x128xf32> to vector<16x128xf32>
    %551 = vector.shape_cast %548 : vector<16x128xf32> to vector<1x16x128xf32>
    tpu.vector_store %arg3[%c0_154, %c0_155, %c0_156], %551 {strides = array<i32>} : memref<2x16x128xf32, #tpu.memory_space<vmem>>, vector<1x16x128xf32>,
    %552 = vector.extract_strided_slice %542 {offsets = [24, 0], sizes = [16, 128], strides = [1, 1]} : vector<48x128xf32> to vector<16x128xf32>
    %553 = arith.negf %552 : vector<16x128xf32>
    %554 = math.exp %553 : vector<16x128xf32>
    %cst_157 = arith.constant 1.000000e+00 : f32
    %555 = vector.broadcast %cst_157 : f32 to vector<16x128xf32>
    %556 = arith.addf %555, %554 : vector<16x128xf32>
    %557 = arith.divf %555, %556 : vector<16x128xf32>
    %c1_158 = arith.constant 1 : index
    %c0_159 = arith.constant 0 : index
    %c0_160 = arith.constant 0 : index
    %558 = vector.load %arg3[%c1_158, %c0_159, %c0_160] : memref<2x16x128xf32, #tpu.memory_space<vmem>>, vector<1x16x128xf32>
    %559 = vector.shape_cast %558 : vector<1x16x128xf32> to vector<16x128xf32>
    %560 = vector.shape_cast %557 : vector<16x128xf32> to vector<1x16x128xf32>
    tpu.vector_store %arg3[%c1_158, %c0_159, %c0_160], %560 {strides = array<i32>} : memref<2x16x128xf32, #tpu.memory_space<vmem>>, vector<1x16x128xf32>,
    return
  }
  func.func @transform_0(%arg0: i32) -> i32 {
    %c0_i32 = arith.constant 0 : i32
    %c0_i32_0 = arith.constant 0 : i32
    return %c0_i32 : i32
  }
  func.func @transform_1(%arg0: i32) -> (i32, i32, i32, i32) {
    %c0_i32 = arith.constant 0 : i32
    %c0_i32_0 = arith.constant 0 : i32
    %c0_i32_1 = arith.constant 0 : i32
    %c0_i32_2 = arith.constant 0 : i32
    return %arg0, %c0_i32, %c0_i32_0, %c0_i32_1 : i32, i32, i32, i32
  }
  func.func @transform_2(%arg0: i32) -> (i32, i32, i32) {
    %c0_i32 = arith.constant 0 : i32
    %c0_i32_0 = arith.constant 0 : i32
    %c0_i32_1 = arith.constant 0 : i32
    return %arg0, %c0_i32, %c0_i32_0 : i32, i32, i32
  }
}

</mosaic_0001>

<llo_original>
// kernel: tpu_custom_call.1
$region0: #{tpu_custom_call.1}
  #allocation0 [shape = 'u32[]', space=smem, size = 0x4, offset = 0x4, fixed_abs, tag = 'smem constant byte address 0x4 - core index']
  #allocation1 [shape = 'u32[72,128]{1,0:T(1,128)}', space=vmem, size = 0x9000, scoped, tag = 'internal scratch']
  #allocation2 [shape = 'f32[2,64,128]{2,1,0:T(8,128)}', space=vmem, size = 0x10000, scoped, tag = 'scratch operand']
  %s0 = inlined_call_operand.hbm [shape: f32[98], index: 0, kind: input, shape index: {}]
  %s1 = inlined_call_operand.hbm [shape: f32[2,4,16,16], index: 1, kind: input, shape index: {}]
  %s2 = inlined_call_operand.hbm [shape: f32[2,16,128], index: 2, kind: output, shape index: {}]
  %s3 = sld [smem:[#allocation0]]
  $region26: #{tpu_custom_call.1} parent=0
    _
  %s5 = ssub.s32 1, %s3
  %s6 = scalar_select 0, %s5, %s3
  $region1: #{tpu_custom_call.1} parent=0
    #allocation3 [shape = 'u8[512]{0}', space=smem, size = 0x200, scoped, tag = 'input window, operand 0, single buffered']
    #allocation4 [shape = 's32[1]{0}', space=sflag, size = 0x4, scoped, tag = 'scoped memory for tpu_custom_call.1']
    #allocation5 [shape = 's32[1]{0}', space=sflag, size = 0x4, scoped, tag = 'scoped memory for tpu_custom_call.1']
    #allocation6 [shape = 's32[1]{0}', space=sflag, size = 0x4, scoped, tag = 'scoped memory for tpu_custom_call.1']
    #allocation7 [shape = 'u8[65536]{0}', space=vmem, size = 0x10000, scoped, tag = 'input window, operand 1, single buffered']
    #allocation8 [shape = 'u8[16384]{0}', space=vmem, size = 0x4000, scoped, tag = 'output window, operand 0, single buffered']
    %7 = vsyncpa [#allocation6], 0
    %8 = vsyncpa [#allocation4], 0
    %9 = vsyncpa [#allocation5], 0
    // Predicated region
    $region2: #{tpu_custom_call.1} parent=1 // pred_check
      _
    $region3: #{tpu_custom_call.1} parent=1 // pred_check_branch
      %11 = sbr.rel (0) target = $region5
    $region4: #{tpu_custom_call.1} parent=1 // pred_region
      %13 = vsyncadd [#allocation6], 0
      %s15 = sshll.u32 %s0, 4
      %s16 = int_to_ptr.hbm [resolvable:$true] %s15
      %18 = dma.hbm_to_smem %s16, 16, [#allocation3], [#allocation6]
    $region5: #{tpu_custom_call.1} parent=1 // pred_fallthru
      _
    // Predicated region
    $region6: #{tpu_custom_call.1} parent=1 // pred_check
      _
    $region7: #{tpu_custom_call.1} parent=1 // pred_check_branch
      %20 = sbr.rel (0) target = $region9
    $region8: #{tpu_custom_call.1} parent=1 // pred_region
      %22 = vsyncadd [#allocation4], 0
      %s23 = sshll.u32 %s1, 4
      %s24 = int_to_ptr.hbm [resolvable:$true] %s23
      %s25 = sshll.u32 [#allocation7], 4
      %s26 = int_to_ptr.vmem [resolvable:$true] %s25
      %31 = dma.hbm_to_vmem [thread:$0]  %s24, 2048, %s26, [#allocation4], 128, 128, 8
    $region9: #{tpu_custom_call.1} parent=1 // pred_fallthru
      _
    // Predicated region
    $region10: #{tpu_custom_call.1} parent=1 // pred_check
      _
    $region11: #{tpu_custom_call.1} parent=1 // pred_check_branch
      %33 = sbr.rel (0) target = $region13
    $region12: #{tpu_custom_call.1} parent=1 // pred_region
      %35 = dma.done [#allocation6], 16
    $region13: #{tpu_custom_call.1} parent=1 // pred_fallthru
      _
    // Predicated region
    $region14: #{tpu_custom_call.1} parent=1 // pred_check
      _
    $region15: #{tpu_custom_call.1} parent=1 // pred_check_branch
      %37 = sbr.rel (0) target = $region17
    $region16: #{tpu_custom_call.1} parent=1 // pred_region
      %39 = dma.done [#allocation4], 2048
    $region17: #{tpu_custom_call.1} parent=1 // pred_fallthru
      _
    %40 = sfence
    %v41 = vld [vmem:[#allocation7] sm:$0xff]
    %v42 = vld [vmem:[#allocation7 + $0x8] sm:$0xff]
    %v43 = vld [vmem:[#allocation7 + $0x40] sm:$0xff]
    %v44 = vld [vmem:[#allocation7 + $0x48] sm:$0xff]
    %s45 = scalar_lea.vmem [#allocation7], 16
    %v46 = vld [vmem:[%s45] sm:$0xff]
    %v47 = vld [vmem:[%s45 + $0x8] sm:$0xff]
    %v48 = vld [vmem:[%s45 + $0x40] sm:$0xff]
    %v49 = vld [vmem:[%s45 + $0x48] sm:$0xff]
    %v50 = vadd.f32 %v41, %v46
    %v51 = vadd.f32 %v42, %v47
    %v52 = vadd.f32 %v43, %v48
    %v53 = vadd.f32 %v44, %v49
    %v54 = vmax.f32 %v41, %v46
    %v55 = vmax.f32 %v42, %v47
    %v56 = vmax.f32 %v43, %v48
    %v57 = vmax.f32 %v44, %v49
    %s58 = scalar_lea.vmem [#allocation7], 32
    %v59 = vld [vmem:[%s58] sm:$0xff]
    %v60 = vld [vmem:[%s58 + $0x8] sm:$0xff]
    %v61 = vld [vmem:[%s58 + $0x40] sm:$0xff]
    %v62 = vld [vmem:[%s58 + $0x48] sm:$0xff]
    %v63 = vadd.f32 %v50, %v59
    %v64 = vadd.f32 %v51, %v60
    %v65 = vadd.f32 %v52, %v61
    %v66 = vadd.f32 %v53, %v62
    %v67 = vmax.f32 %v54, %v59
    %v68 = vmax.f32 %v55, %v60
    %v69 = vmax.f32 %v56, %v61
    %v70 = vmax.f32 %v57, %v62
    %s71 = scalar_lea.vmem [#allocation7], 48
    %v72 = vld [vmem:[%s71] sm:$0xff]
    %v73 = vld [vmem:[%s71 + $0x8] sm:$0xff]
    %v74 = vld [vmem:[%s71 + $0x40] sm:$0xff]
    %v75 = vld [vmem:[%s71 + $0x48] sm:$0xff]
    %v76 = vadd.f32 %v63, %v72
    %v77 = vadd.f32 %v64, %v73
    %v78 = vadd.f32 %v65, %v74
    %v79 = vadd.f32 %v66, %v75
    %v80 = vmax.f32 %v67, %v72
    %v81 = vmax.f32 %v68, %v73
    %v82 = vmax.f32 %v69, %v74
    %v83 = vmax.f32 %v70, %v75
    %84 = vst [vmem:[#allocation2] sm:$0xff] 0.0
    %85 = vst [vmem:[#allocation2 + $0x8] sm:$0xff] 0.0
    %86 = vst [vmem:[#allocation2 + $0x10] sm:$0xff] 0.0
    %87 = vst [vmem:[#allocation2 + $0x18] sm:$0xff] 0.0
    %88 = vst [vmem:[#allocation2 + $0x20] sm:$0xff] 0.0
    %89 = vst [vmem:[#allocation2 + $0x28] sm:$0xff] 0.0
    %90 = vst [vmem:[#allocation2 + $0x30] sm:$0xff] 0.0
    %91 = vst [vmem:[#allocation2 + $0x38] sm:$0xff] 0.0
    %92 = vst [vmem:[#allocation2 + $0x40] sm:$0xff] 0.0
    %93 = vst [vmem:[#allocation2 + $0x48] sm:$0xff] 0.0
    %94 = vst [vmem:[#allocation2 + $0x50] sm:$0xff] 0.0
    %95 = vst [vmem:[#allocation2 + $0x58] sm:$0xff] 0.0
    %96 = vst [vmem:[#allocation2 + $0x60] sm:$0xff] 0.0
    %97 = vst [vmem:[#allocation2 + $0x68] sm:$0xff] 0.0
    %98 = vst [vmem:[#allocation2 + $0x70] sm:$0xff] 0.0
    %99 = vst [vmem:[#allocation2 + $0x78] sm:$0xff] 0.0
    %vm100 = vcmask 130048
    %101 = vst.msk [vmem:[#allocation2 + $0x8] sm:$0xff] %vm100, %v76
    %102 = vst.msk [vmem:[#allocation2 + $0x10] sm:$0xff] %vm100, %v77
    %s103 = scalar_lea.vmem [#allocation2], 64
    %104 = vst.msk [vmem:[%s103 + $0x8] sm:$0xff] %vm100, %v80
    %105 = vst.msk [vmem:[%s103 + $0x10] sm:$0xff] %vm100, %v81
    %106 = vst.msk [vmem:[#allocation2 + $0x20] sm:$0xff] %vm100, %v78
    %107 = vst.msk [vmem:[#allocation2 + $0x28] sm:$0xff] %vm100, %v79
    %108 = vst.msk [vmem:[%s103 + $0x20] sm:$0xff] %vm100, %v82
    %109 = vst.msk [vmem:[%s103 + $0x28] sm:$0xff] %vm100, %v83
    %v110 = vld [vmem:[#allocation2 + $0x5] sm:$0xff]
    %v111 = vld [vmem:[#allocation2 + $0xd] sm:$0xff]
    %v112 = vld [vmem:[#allocation2 + $0x1d] sm:$0xff]
    %v113 = vld [vmem:[#allocation2 + $0x25] sm:$0xff]
    %114 = vrot.lane.b32.xlu0 %v110, 3
    %v115 = vpop.permute.xlu0 %114
    %116 = vrot.lane.b32.xlu0 %v111, 3
    %v117 = vpop.permute.xlu0 %116
    %118 = vrot.lane.b32.xlu0 %v112, 3
    %v119 = vpop.permute.xlu0 %118
    %120 = vrot.lane.b32.xlu0 %v113, 3
    %v121 = vpop.permute.xlu0 %120
    %s122 = sld [smem:[#allocation3]]
    %v123 = vstv %s122
    %v124 = vmul.f32 %v123, %v115
    %v125 = vmul.f32 %v123, %v117
    %v126 = vmul.f32 %v123, %v119
    %v127 = vmul.f32 %v123, %v121
    %v128 = vadd.f32 %v124, 0.0
    %v129 = vadd.f32 %v125, 0.0
    %v130 = vadd.f32 %v126, 0.0
    %v131 = vadd.f32 %v127, 0.0
    %132 = vrot.lane.b32.xlu0 %v110, 2
    %v133 = vpop.permute.xlu0 %132
    %134 = vrot.lane.b32.xlu0 %v111, 2
    %v135 = vpop.permute.xlu0 %134
    %136 = vrot.lane.b32.xlu0 %v112, 2
    %v137 = vpop.permute.xlu0 %136
    %138 = vrot.lane.b32.xlu0 %v113, 2
    %v139 = vpop.permute.xlu0 %138
    %s140 = sld [smem:[#allocation3 + $0x1]]
    %v141 = vstv %s140
    %v142 = vmul.f32 %v141, %v133
    %v143 = vmul.f32 %v141, %v135
    %v144 = vmul.f32 %v141, %v137
    %v145 = vmul.f32 %v141, %v139
    %v146 = vadd.f32 %v142, 0.0
    %v147 = vadd.f32 %v143, 0.0
    %v148 = vadd.f32 %v144, 0.0
    %v149 = vadd.f32 %v145, 0.0
    %150 = vrot.lane.b32.xlu0 %v110, 1
    %v151 = vpop.permute.xlu0 %150
    %152 = vrot.lane.b32.xlu0 %v111, 1
    %v153 = vpop.permute.xlu0 %152
    %154 = vrot.lane.b32.xlu0 %v112, 1
    %v155 = vpop.permute.xlu0 %154
    %156 = vrot.lane.b32.xlu0 %v113, 1
    %v157 = vpop.permute.xlu0 %156
    %s158 = sld [smem:[#allocation3 + $0x2]]
    %v159 = vstv %s158
    %v160 = vmul.f32 %v159, %v151
    %v161 = vmul.f32 %v159, %v153
    %v162 = vmul.f32 %v159, %v155
    %v163 = vmul.f32 %v159, %v157
    %v164 = vadd.f32 %v128, %v160
    %v165 = vadd.f32 %v129, %v161
    %v166 = vadd.f32 %v130, %v162
    %v167 = vadd.f32 %v131, %v163
    %s168 = sld [smem:[#allocation3 + $0x3]]
    %v169 = vstv %s168
    %v170 = vmul.f32 %v169, %v110
    %v171 = vmul.f32 %v169, %v111
    %v172 = vmul.f32 %v169, %v112
    %v173 = vmul.f32 %v169, %v113
    %v174 = vadd.f32 %v146, %v170
    %v175 = vadd.f32 %v147, %v171
    %v176 = vadd.f32 %v148, %v172
    %v177 = vadd.f32 %v149, %v173
    %178 = vrot.lane.b32.xlu0 %v110, 127
    %v179 = vpop.permute.xlu0 %178
    %180 = vrot.lane.b32.xlu0 %v111, 127
    %v181 = vpop.permute.xlu0 %180
    %182 = vrot.lane.b32.xlu0 %v112, 127
    %v183 = vpop.permute.xlu0 %182
    %184 = vrot.lane.b32.xlu0 %v113, 127
    %v185 = vpop.permute.xlu0 %184
    %s186 = sld [smem:[#allocation3 + $0x4]]
    %v187 = vstv %s186
    %v188 = vmul.f32 %v187, %v179
    %v189 = vmul.f32 %v187, %v181
    %v190 = vmul.f32 %v187, %v183
    %v191 = vmul.f32 %v187, %v185
    %v192 = vadd.f32 %v164, %v188
    %v193 = vadd.f32 %v165, %v189
    %v194 = vadd.f32 %v166, %v190
    %v195 = vadd.f32 %v167, %v191
    %196 = vrot.lane.b32.xlu0 %v110, 126
    %v197 = vpop.permute.xlu0 %196
    %198 = vrot.lane.b32.xlu0 %v111, 126
    %v199 = vpop.permute.xlu0 %198
    %200 = vrot.lane.b32.xlu0 %v112, 126
    %v201 = vpop.permute.xlu0 %200
    %202 = vrot.lane.b32.xlu0 %v113, 126
    %v203 = vpop.permute.xlu0 %202
    %s204 = sld [smem:[#allocation3 + $0x5]]
    %v205 = vstv %s204
    %v206 = vmul.f32 %v205, %v197
    %v207 = vmul.f32 %v205, %v199
    %v208 = vmul.f32 %v205, %v201
    %v209 = vmul.f32 %v205, %v203
    %v210 = vadd.f32 %v174, %v206
    %v211 = vadd.f32 %v175, %v207
    %v212 = vadd.f32 %v176, %v208
    %v213 = vadd.f32 %v177, %v209
    %214 = vrot.lane.b32.xlu0 %v110, 125
    %v215 = vpop.permute.xlu0 %214
    %216 = vrot.lane.b32.xlu0 %v111, 125
    %v217 = vpop.permute.xlu0 %216
    %218 = vrot.lane.b32.xlu0 %v112, 125
    %v219 = vpop.permute.xlu0 %218
    %220 = vrot.lane.b32.xlu0 %v113, 125
    %v221 = vpop.permute.xlu0 %220
    %s222 = sld [smem:[#allocation3 + $0x6]]
    %v223 = vstv %s222
    %v224 = vmul.f32 %v223, %v215
    %v225 = vmul.f32 %v223, %v217
    %v226 = vmul.f32 %v223, %v219
    %v227 = vmul.f32 %v223, %v221
    %v228 = vadd.f32 %v192, %v224
    %v229 = vadd.f32 %v193, %v225
    %v230 = vadd.f32 %v194, %v226
    %v231 = vadd.f32 %v195, %v227
    %v232 = vld [vmem:[#allocation2 + $0x6] sm:$0xff]
    %v233 = vld [vmem:[#allocation2 + $0xe] sm:$0xff]
    %v234 = vld [vmem:[#allocation2 + $0x1e] sm:$0xff]
    %v235 = vld [vmem:[#allocation2 + $0x26] sm:$0xff]
    %236 = vrot.lane.b32.xlu0 %v232, 3
    %v237 = vpop.permute.xlu0 %236
    %238 = vrot.lane.b32.xlu0 %v233, 3
    %v239 = vpop.permute.xlu0 %238
    %240 = vrot.lane.b32.xlu0 %v234, 3
    %v241 = vpop.permute.xlu0 %240
    %242 = vrot.lane.b32.xlu0 %v235, 3
    %v243 = vpop.permute.xlu0 %242
    %s244 = sld [smem:[#allocation3 + $0x7]]
    %v245 = vstv %s244
    %v246 = vmul.f32 %v245, %v237
    %v247 = vmul.f32 %v245, %v239
    %v248 = vmul.f32 %v245, %v241
    %v249 = vmul.f32 %v245, %v243
    %v250 = vadd.f32 %v210, %v246
    %v251 = vadd.f32 %v211, %v247
    %v252 = vadd.f32 %v212, %v248
    %v253 = vadd.f32 %v213, %v249
    %254 = vrot.lane.b32.xlu0 %v232, 2
    %v255 = vpop.permute.xlu0 %254
    %256 = vrot.lane.b32.xlu0 %v233, 2
    %v257 = vpop.permute.xlu0 %256
    %258 = vrot.lane.b32.xlu0 %v234, 2
    %v259 = vpop.permute.xlu0 %258
    %260 = vrot.lane.b32.xlu0 %v235, 2
    %v261 = vpop.permute.xlu0 %260
    %s262 = sld [smem:[#allocation3 + $0x8]]
    %v263 = vstv %s262
    %v264 = vmul.f32 %v263, %v255
    %v265 = vmul.f32 %v263, %v257
    %v266 = vmul.f32 %v263, %v259
    %v267 = vmul.f32 %v263, %v261
    %v268 = vadd.f32 %v228, %v264
    %v269 = vadd.f32 %v229, %v265
    %v270 = vadd.f32 %v230, %v266
    %v271 = vadd.f32 %v231, %v267
    %272 = vrot.lane.b32.xlu0 %v232, 1
    %v273 = vpop.permute.xlu0 %272
    %274 = vrot.lane.b32.xlu0 %v233, 1
    %v275 = vpop.permute.xlu0 %274
    %276 = vrot.lane.b32.xlu0 %v234, 1
    %v277 = vpop.permute.xlu0 %276
    %278 = vrot.lane.b32.xlu0 %v235, 1
    %v279 = vpop.permute.xlu0 %278
    %s280 = sld [smem:[#allocation3 + $0x9]]
    %v281 = vstv %s280
    %v282 = vmul.f32 %v281, %v273
    %v283 = vmul.f32 %v281, %v275
    %v284 = vmul.f32 %v281, %v277
    %v285 = vmul.f32 %v281, %v279
    %v286 = vadd.f32 %v250, %v282
    %v287 = vadd.f32 %v251, %v283
    %v288 = vadd.f32 %v252, %v284
    %v289 = vadd.f32 %v253, %v285
    %s290 = sld [smem:[#allocation3 + $0xa]]
    %v291 = vstv %s290
    %v292 = vmul.f32 %v291, %v232
    %v293 = vmul.f32 %v291, %v233
    %v294 = vmul.f32 %v291, %v234
    %v295 = vmul.f32 %v291, %v235
    %v296 = vadd.f32 %v268, %v292
    %v297 = vadd.f32 %v269, %v293
    %v298 = vadd.f32 %v270, %v294
    %v299 = vadd.f32 %v271, %v295
    %300 = vrot.lane.b32.xlu0 %v232, 127
    %v301 = vpop.permute.xlu0 %300
    %302 = vrot.lane.b32.xlu0 %v233, 127
    %v303 = vpop.permute.xlu0 %302
    %304 = vrot.lane.b32.xlu0 %v234, 127
    %v305 = vpop.permute.xlu0 %304
    %306 = vrot.lane.b32.xlu0 %v235, 127
    %v307 = vpop.permute.xlu0 %306
    %s308 = sld [smem:[#allocation3 + $0xb]]
    %v309 = vstv %s308
    %v310 = vmul.f32 %v309, %v301
    %v311 = vmul.f32 %v309, %v303
    %v312 = vmul.f32 %v309, %v305
    %v313 = vmul.f32 %v309, %v307
    %v314 = vadd.f32 %v286, %v310
    %v315 = vadd.f32 %v287, %v311
    %v316 = vadd.f32 %v288, %v312
    %v317 = vadd.f32 %v289, %v313
    %318 = vrot.lane.b32.xlu0 %v232, 126
    %v319 = vpop.permute.xlu0 %318
    %320 = vrot.lane.b32.xlu0 %v233, 126
    %v321 = vpop.permute.xlu0 %320
    %322 = vrot.lane.b32.xlu0 %v234, 126
    %v323 = vpop.permute.xlu0 %322
    %324 = vrot.lane.b32.xlu0 %v235, 126
    %v325 = vpop.permute.xlu0 %324
    %s326 = sld [smem:[#allocation3 + $0xc]]
    %v327 = vstv %s326
    %v328 = vmul.f32 %v327, %v319
    %v329 = vmul.f32 %v327, %v321
    %v330 = vmul.f32 %v327, %v323
    %v331 = vmul.f32 %v327, %v325
    %v332 = vadd.f32 %v296, %v328
    %v333 = vadd.f32 %v297, %v329
    %v334 = vadd.f32 %v298, %v330
    %v335 = vadd.f32 %v299, %v331
    %336 = vrot.lane.b32.xlu0 %v232, 125
    %v337 = vpop.permute.xlu0 %336
    %338 = vrot.lane.b32.xlu0 %v233, 125
    %v339 = vpop.permute.xlu0 %338
    %340 = vrot.lane.b32.xlu0 %v234, 125
    %v341 = vpop.permute.xlu0 %340
    %342 = vrot.lane.b32.xlu0 %v235, 125
    %v343 = vpop.permute.xlu0 %342
    %s344 = sld [smem:[#allocation3 + $0xd]]
    %v345 = vstv %s344
    %v346 = vmul.f32 %v345, %v337
    %v347 = vmul.f32 %v345, %v339
    %v348 = vmul.f32 %v345, %v341
    %v349 = vmul.f32 %v345, %v343
    %v350 = vadd.f32 %v314, %v346
    %v351 = vadd.f32 %v315, %v347
    %v352 = vadd.f32 %v316, %v348
    %v353 = vadd.f32 %v317, %v349
    %v354 = vld [vmem:[#allocation2 + $0x7] sm:$0xff]
    %v355 = vld [vmem:[#allocation2 + $0xf] sm:$0xff]
    %v356 = vld [vmem:[#allocation2 + $0x1f] sm:$0xff]
    %v357 = vld [vmem:[#allocation2 + $0x27] sm:$0xff]
    %358 = vrot.lane.b32.xlu0 %v354, 3
    %v359 = vpop.permute.xlu0 %358
    %360 = vrot.lane.b32.xlu0 %v355, 3
    %v361 = vpop.permute.xlu0 %360
    %362 = vrot.lane.b32.xlu0 %v356, 3
    %v363 = vpop.permute.xlu0 %362
    %364 = vrot.lane.b32.xlu0 %v357, 3
    %v365 = vpop.permute.xlu0 %364
    %s366 = sld [smem:[#allocation3 + $0xe]]
    %v367 = vstv %s366
    %v368 = vmul.f32 %v367, %v359
    %v369 = vmul.f32 %v367, %v361
    %v370 = vmul.f32 %v367, %v363
    %v371 = vmul.f32 %v367, %v365
    %v372 = vadd.f32 %v332, %v368
    %v373 = vadd.f32 %v333, %v369
    %v374 = vadd.f32 %v334, %v370
    %v375 = vadd.f32 %v335, %v371
    %376 = vrot.lane.b32.xlu0 %v354, 2
    %v377 = vpop.permute.xlu0 %376
    %378 = vrot.lane.b32.xlu0 %v355, 2
    %v379 = vpop.permute.xlu0 %378
    %380 = vrot.lane.b32.xlu0 %v356, 2
    %v381 = vpop.permute.xlu0 %380
    %382 = vrot.lane.b32.xlu0 %v357, 2
    %v383 = vpop.permute.xlu0 %382
    %s384 = sld [smem:[#allocation3 + $0xf]]
    %v385 = vstv %s384
    %v386 = vmul.f32 %v385, %v377
    %v387 = vmul.f32 %v385, %v379
    %v388 = vmul.f32 %v385, %v381
    %v389 = vmul.f32 %v385, %v383
    %v390 = vadd.f32 %v350, %v386
    %v391 = vadd.f32 %v351, %v387
    %v392 = vadd.f32 %v352, %v388
    %v393 = vadd.f32 %v353, %v389
    %394 = vrot.lane.b32.xlu0 %v354, 1
    %v395 = vpop.permute.xlu0 %394
    %396 = vrot.lane.b32.xlu0 %v355, 1
    %v397 = vpop.permute.xlu0 %396
    %398 = vrot.lane.b32.xlu0 %v356, 1
    %v399 = vpop.permute.xlu0 %398
    %400 = vrot.lane.b32.xlu0 %v357, 1
    %v401 = vpop.permute.xlu0 %400
    %s402 = sld [smem:[#allocation3 + $0x10]]
    %v403 = vstv %s402
    %v404 = vmul.f32 %v403, %v395
    %v405 = vmul.f32 %v403, %v397
    %v406 = vmul.f32 %v403, %v399
    %v407 = vmul.f32 %v403, %v401
    %v408 = vadd.f32 %v372, %v404
    %v409 = vadd.f32 %v373, %v405
    %v410 = vadd.f32 %v374, %v406
    %v411 = vadd.f32 %v375, %v407
    %s412 = sld [smem:[#allocation3 + $0x11]]
    %v413 = vstv %s412
    %v414 = vmul.f32 %v413, %v354
    %v415 = vmul.f32 %v413, %v355
    %v416 = vmul.f32 %v413, %v356
    %v417 = vmul.f32 %v413, %v357
    %v418 = vadd.f32 %v390, %v414
    %v419 = vadd.f32 %v391, %v415
    %v420 = vadd.f32 %v392, %v416
    %v421 = vadd.f32 %v393, %v417
    %422 = vrot.lane.b32.xlu0 %v354, 127
    %v423 = vpop.permute.xlu0 %422
    %424 = vrot.lane.b32.xlu0 %v355, 127
    %v425 = vpop.permute.xlu0 %424
    %426 = vrot.lane.b32.xlu0 %v356, 127
    %v427 = vpop.permute.xlu0 %426
    %428 = vrot.lane.b32.xlu0 %v357, 127
    %v429 = vpop.permute.xlu0 %428
    %s430 = sld [smem:[#allocation3 + $0x12]]
    %v431 = vstv %s430
    %v432 = vmul.f32 %v431, %v423
    %v433 = vmul.f32 %v431, %v425
    %v434 = vmul.f32 %v431, %v427
    %v435 = vmul.f32 %v431, %v429
    %v436 = vadd.f32 %v408, %v432
    %v437 = vadd.f32 %v409, %v433
    %v438 = vadd.f32 %v410, %v434
    %v439 = vadd.f32 %v411, %v435
    %440 = vrot.lane.b32.xlu0 %v354, 126
    %v441 = vpop.permute.xlu0 %440
    %442 = vrot.lane.b32.xlu0 %v355, 126
    %v443 = vpop.permute.xlu0 %442
    %444 = vrot.lane.b32.xlu0 %v356, 126
    %v445 = vpop.permute.xlu0 %444
    %446 = vrot.lane.b32.xlu0 %v357, 126
    %v447 = vpop.permute.xlu0 %446
    %s448 = sld [smem:[#allocation3 + $0x13]]
    %v449 = vstv %s448
    %v450 = vmul.f32 %v449, %v441
    %v451 = vmul.f32 %v449, %v443
    %v452 = vmul.f32 %v449, %v445
    %v453 = vmul.f32 %v449, %v447
    %v454 = vadd.f32 %v418, %v450
    %v455 = vadd.f32 %v419, %v451
    %v456 = vadd.f32 %v420, %v452
    %v457 = vadd.f32 %v421, %v453
    %458 = vrot.lane.b32.xlu0 %v354, 125
    %v459 = vpop.permute.xlu0 %458
    %460 = vrot.lane.b32.xlu0 %v355, 125
    %v461 = vpop.permute.xlu0 %460
    %462 = vrot.lane.b32.xlu0 %v356, 125
    %v463 = vpop.permute.xlu0 %462
    %464 = vrot.lane.b32.xlu0 %v357, 125
    %v465 = vpop.permute.xlu0 %464
    %s466 = sld [smem:[#allocation3 + $0x14]]
    %v467 = vstv %s466
    %v468 = vmul.f32 %v467, %v459
    %v469 = vmul.f32 %v467, %v461
    %v470 = vmul.f32 %v467, %v463
    %v471 = vmul.f32 %v467, %v465
    %v472 = vadd.f32 %v436, %v468
    %v473 = vadd.f32 %v437, %v469
    %v474 = vadd.f32 %v438, %v470
    %v475 = vadd.f32 %v439, %v471
    %v476 = vld [vmem:[#allocation2 + $0x8] sm:$0xff]
    %v477 = vld [vmem:[#allocation2 + $0x10] sm:$0xff]
    %v478 = vld [vmem:[#allocation2 + $0x20] sm:$0xff]
    %v479 = vld [vmem:[#allocation2 + $0x28] sm:$0xff]
    %480 = vrot.lane.b32.xlu0 %v476, 3
    %v481 = vpop.permute.xlu0 %480
    %482 = vrot.lane.b32.xlu0 %v477, 3
    %v483 = vpop.permute.xlu0 %482
    %484 = vrot.lane.b32.xlu0 %v478, 3
    %v485 = vpop.permute.xlu0 %484
    %486 = vrot.lane.b32.xlu0 %v479, 3
    %v487 = vpop.permute.xlu0 %486
    %s488 = sld [smem:[#allocation3 + $0x15]]
    %v489 = vstv %s488
    %v490 = vmul.f32 %v489, %v481
    %v491 = vmul.f32 %v489, %v483
    %v492 = vmul.f32 %v489, %v485
    %v493 = vmul.f32 %v489, %v487
    %v494 = vadd.f32 %v454, %v490
    %v495 = vadd.f32 %v455, %v491
    %v496 = vadd.f32 %v456, %v492
    %v497 = vadd.f32 %v457, %v493
    %498 = vrot.lane.b32.xlu0 %v476, 2
    %v499 = vpop.permute.xlu0 %498
    %500 = vrot.lane.b32.xlu0 %v477, 2
    %v501 = vpop.permute.xlu0 %500
    %502 = vrot.lane.b32.xlu0 %v478, 2
    %v503 = vpop.permute.xlu0 %502
    %504 = vrot.lane.b32.xlu0 %v479, 2
    %v505 = vpop.permute.xlu0 %504
    %s506 = sld [smem:[#allocation3 + $0x16]]
    %v507 = vstv %s506
    %v508 = vmul.f32 %v507, %v499
    %v509 = vmul.f32 %v507, %v501
    %v510 = vmul.f32 %v507, %v503
    %v511 = vmul.f32 %v507, %v505
    %v512 = vadd.f32 %v472, %v508
    %v513 = vadd.f32 %v473, %v509
    %v514 = vadd.f32 %v474, %v510
    %v515 = vadd.f32 %v475, %v511
    %516 = vrot.lane.b32.xlu0 %v476, 1
    %v517 = vpop.permute.xlu0 %516
    %518 = vrot.lane.b32.xlu0 %v477, 1
    %v519 = vpop.permute.xlu0 %518
    %520 = vrot.lane.b32.xlu0 %v478, 1
    %v521 = vpop.permute.xlu0 %520
    %522 = vrot.lane.b32.xlu0 %v479, 1
    %v523 = vpop.permute.xlu0 %522
    %s524 = sld [smem:[#allocation3 + $0x17]]
    %v525 = vstv %s524
    %v526 = vmul.f32 %v525, %v517
    %v527 = vmul.f32 %v525, %v519
    %v528 = vmul.f32 %v525, %v521
    %v529 = vmul.f32 %v525, %v523
    %v530 = vadd.f32 %v494, %v526
    %v531 = vadd.f32 %v495, %v527
    %v532 = vadd.f32 %v496, %v528
    %v533 = vadd.f32 %v497, %v529
    %s534 = sld [smem:[#allocation3 + $0x18]]
    %v535 = vstv %s534
    %v536 = vmul.f32 %v535, %v476
    %v537 = vmul.f32 %v535, %v477
    %v538 = vmul.f32 %v535, %v478
    %v539 = vmul.f32 %v535, %v479
    %v540 = vadd.f32 %v512, %v536
    %v541 = vadd.f32 %v513, %v537
    %v542 = vadd.f32 %v514, %v538
    %v543 = vadd.f32 %v515, %v539
    %544 = vrot.lane.b32.xlu0 %v476, 127
    %v545 = vpop.permute.xlu0 %544
    %546 = vrot.lane.b32.xlu0 %v477, 127
    %v547 = vpop.permute.xlu0 %546
    %548 = vrot.lane.b32.xlu0 %v478, 127
    %v549 = vpop.permute.xlu0 %548
    %550 = vrot.lane.b32.xlu0 %v479, 127
    %v551 = vpop.permute.xlu0 %550
    %s552 = sld [smem:[#allocation3 + $0x19]]
    %v553 = vstv %s552
    %v554 = vmul.f32 %v553, %v545
    %v555 = vmul.f32 %v553, %v547
    %v556 = vmul.f32 %v553, %v549
    %v557 = vmul.f32 %v553, %v551
    %v558 = vadd.f32 %v530, %v554
    %v559 = vadd.f32 %v531, %v555
    %v560 = vadd.f32 %v532, %v556
    %v561 = vadd.f32 %v533, %v557
    %562 = vrot.lane.b32.xlu0 %v476, 126
    %v563 = vpop.permute.xlu0 %562
    %564 = vrot.lane.b32.xlu0 %v477, 126
    %v565 = vpop.permute.xlu0 %564
    %566 = vrot.lane.b32.xlu0 %v478, 126
    %v567 = vpop.permute.xlu0 %566
    %568 = vrot.lane.b32.xlu0 %v479, 126
    %v569 = vpop.permute.xlu0 %568
    %s570 = sld [smem:[#allocation3 + $0x1a]]
    %v571 = vstv %s570
    %v572 = vmul.f32 %v571, %v563
    %v573 = vmul.f32 %v571, %v565
    %v574 = vmul.f32 %v571, %v567
    %v575 = vmul.f32 %v571, %v569
    %v576 = vadd.f32 %v540, %v572
    %v577 = vadd.f32 %v541, %v573
    %v578 = vadd.f32 %v542, %v574
    %v579 = vadd.f32 %v543, %v575
    %580 = vrot.lane.b32.xlu0 %v476, 125
    %v581 = vpop.permute.xlu0 %580
    %582 = vrot.lane.b32.xlu0 %v477, 125
    %v583 = vpop.permute.xlu0 %582
    %584 = vrot.lane.b32.xlu0 %v478, 125
    %v585 = vpop.permute.xlu0 %584
    %586 = vrot.lane.b32.xlu0 %v479, 125
    %v587 = vpop.permute.xlu0 %586
    %s588 = sld [smem:[#allocation3 + $0x1b]]
    %v589 = vstv %s588
    %v590 = vmul.f32 %v589, %v581
    %v591 = vmul.f32 %v589, %v583
    %v592 = vmul.f32 %v589, %v585
    %v593 = vmul.f32 %v589, %v587
    %v594 = vadd.f32 %v558, %v590
    %v595 = vadd.f32 %v559, %v591
    %v596 = vadd.f32 %v560, %v592
    %v597 = vadd.f32 %v561, %v593
    %v598 = vld [vmem:[#allocation2 + $0x9] sm:$0xff]
    %v599 = vld [vmem:[#allocation2 + $0x11] sm:$0xff]
    %v600 = vld [vmem:[#allocation2 + $0x21] sm:$0xff]
    %v601 = vld [vmem:[#allocation2 + $0x29] sm:$0xff]
    %602 = vrot.lane.b32.xlu0 %v598, 3
    %v603 = vpop.permute.xlu0 %602
    %604 = vrot.lane.b32.xlu0 %v599, 3
    %v605 = vpop.permute.xlu0 %604
    %606 = vrot.lane.b32.xlu0 %v600, 3
    %v607 = vpop.permute.xlu0 %606
    %608 = vrot.lane.b32.xlu0 %v601, 3
    %v609 = vpop.permute.xlu0 %608
    %s610 = sld [smem:[#allocation3 + $0x1c]]
    %v611 = vstv %s610
    %v612 = vmul.f32 %v611, %v603
    %v613 = vmul.f32 %v611, %v605
    %v614 = vmul.f32 %v611, %v607
    %v615 = vmul.f32 %v611, %v609
    %v616 = vadd.f32 %v576, %v612
    %v617 = vadd.f32 %v577, %v613
    %v618 = vadd.f32 %v578, %v614
    %v619 = vadd.f32 %v579, %v615
    %620 = vrot.lane.b32.xlu0 %v598, 2
    %v621 = vpop.permute.xlu0 %620
    %622 = vrot.lane.b32.xlu0 %v599, 2
    %v623 = vpop.permute.xlu0 %622
    %624 = vrot.lane.b32.xlu0 %v600, 2
    %v625 = vpop.permute.xlu0 %624
    %626 = vrot.lane.b32.xlu0 %v601, 2
    %v627 = vpop.permute.xlu0 %626
    %s628 = sld [smem:[#allocation3 + $0x1d]]
    %v629 = vstv %s628
    %v630 = vmul.f32 %v629, %v621
    %v631 = vmul.f32 %v629, %v623
    %v632 = vmul.f32 %v629, %v625
    %v633 = vmul.f32 %v629, %v627
    %v634 = vadd.f32 %v594, %v630
    %v635 = vadd.f32 %v595, %v631
    %v636 = vadd.f32 %v596, %v632
    %v637 = vadd.f32 %v597, %v633
    %638 = vrot.lane.b32.xlu0 %v598, 1
    %v639 = vpop.permute.xlu0 %638
    %640 = vrot.lane.b32.xlu0 %v599, 1
    %v641 = vpop.permute.xlu0 %640
    %642 = vrot.lane.b32.xlu0 %v600, 1
    %v643 = vpop.permute.xlu0 %642
    %644 = vrot.lane.b32.xlu0 %v601, 1
    %v645 = vpop.permute.xlu0 %644
    %s646 = sld [smem:[#allocation3 + $0x1e]]
    %v647 = vstv %s646
    %v648 = vmul.f32 %v647, %v639
    %v649 = vmul.f32 %v647, %v641
    %v650 = vmul.f32 %v647, %v643
    %v651 = vmul.f32 %v647, %v645
    %v652 = vadd.f32 %v616, %v648
    %v653 = vadd.f32 %v617, %v649
    %v654 = vadd.f32 %v618, %v650
    %v655 = vadd.f32 %v619, %v651
    %s656 = sld [smem:[#allocation3 + $0x1f]]
    %v657 = vstv %s656
    %v658 = vmul.f32 %v657, %v598
    %v659 = vmul.f32 %v657, %v599
    %v660 = vmul.f32 %v657, %v600
    %v661 = vmul.f32 %v657, %v601
    %v662 = vadd.f32 %v634, %v658
    %v663 = vadd.f32 %v635, %v659
    %v664 = vadd.f32 %v636, %v660
    %v665 = vadd.f32 %v637, %v661
    %666 = vrot.lane.b32.xlu0 %v598, 127
    %v667 = vpop.permute.xlu0 %666
    %668 = vrot.lane.b32.xlu0 %v599, 127
    %v669 = vpop.permute.xlu0 %668
    %670 = vrot.lane.b32.xlu0 %v600, 127
    %v671 = vpop.permute.xlu0 %670
    %672 = vrot.lane.b32.xlu0 %v601, 127
    %v673 = vpop.permute.xlu0 %672
    %s674 = sld [smem:[#allocation3 + $0x20]]
    %v675 = vstv %s674
    %v676 = vmul.f32 %v675, %v667
    %v677 = vmul.f32 %v675, %v669
    %v678 = vmul.f32 %v675, %v671
    %v679 = vmul.f32 %v675, %v673
    %v680 = vadd.f32 %v652, %v676
    %v681 = vadd.f32 %v653, %v677
    %v682 = vadd.f32 %v654, %v678
    %v683 = vadd.f32 %v655, %v679
    %684 = vrot.lane.b32.xlu0 %v598, 126
    %v685 = vpop.permute.xlu0 %684
    %686 = vrot.lane.b32.xlu0 %v599, 126
    %v687 = vpop.permute.xlu0 %686
    %688 = vrot.lane.b32.xlu0 %v600, 126
    %v689 = vpop.permute.xlu0 %688
    %690 = vrot.lane.b32.xlu0 %v601, 126
    %v691 = vpop.permute.xlu0 %690
    %s692 = sld [smem:[#allocation3 + $0x21]]
    %v693 = vstv %s692
    %v694 = vmul.f32 %v693, %v685
    %v695 = vmul.f32 %v693, %v687
    %v696 = vmul.f32 %v693, %v689
    %v697 = vmul.f32 %v693, %v691
    %v698 = vadd.f32 %v662, %v694
    %v699 = vadd.f32 %v663, %v695
    %v700 = vadd.f32 %v664, %v696
    %v701 = vadd.f32 %v665, %v697
    %702 = vrot.lane.b32.xlu0 %v598, 125
    %v703 = vpop.permute.xlu0 %702
    %704 = vrot.lane.b32.xlu0 %v599, 125
    %v705 = vpop.permute.xlu0 %704
    %706 = vrot.lane.b32.xlu0 %v600, 125
    %v707 = vpop.permute.xlu0 %706
    %708 = vrot.lane.b32.xlu0 %v601, 125
    %v709 = vpop.permute.xlu0 %708
    %s710 = sld [smem:[#allocation3 + $0x22]]
    %v711 = vstv %s710
    %v712 = vmul.f32 %v711, %v703
    %v713 = vmul.f32 %v711, %v705
    %v714 = vmul.f32 %v711, %v707
    %v715 = vmul.f32 %v711, %v709
    %v716 = vadd.f32 %v680, %v712
    %v717 = vadd.f32 %v681, %v713
    %v718 = vadd.f32 %v682, %v714
    %v719 = vadd.f32 %v683, %v715
    %v720 = vld [vmem:[#allocation2 + $0xa] sm:$0xff]
    %v721 = vld [vmem:[#allocation2 + $0x12] sm:$0xff]
    %v722 = vld [vmem:[#allocation2 + $0x22] sm:$0xff]
    %v723 = vld [vmem:[#allocation2 + $0x2a] sm:$0xff]
    %724 = vrot.lane.b32.xlu0 %v720, 3
    %v725 = vpop.permute.xlu0 %724
    %726 = vrot.lane.b32.xlu0 %v721, 3
    %v727 = vpop.permute.xlu0 %726
    %728 = vrot.lane.b32.xlu0 %v722, 3
    %v729 = vpop.permute.xlu0 %728
    %730 = vrot.lane.b32.xlu0 %v723, 3
    %v731 = vpop.permute.xlu0 %730
    %s732 = sld [smem:[#allocation3 + $0x23]]
    %v733 = vstv %s732
    %v734 = vmul.f32 %v733, %v725
    %v735 = vmul.f32 %v733, %v727
    %v736 = vmul.f32 %v733, %v729
    %v737 = vmul.f32 %v733, %v731
    %v738 = vadd.f32 %v698, %v734
    %v739 = vadd.f32 %v699, %v735
    %v740 = vadd.f32 %v700, %v736
    %v741 = vadd.f32 %v701, %v737
    %742 = vrot.lane.b32.xlu0 %v720, 2
    %v743 = vpop.permute.xlu0 %742
    %744 = vrot.lane.b32.xlu0 %v721, 2
    %v745 = vpop.permute.xlu0 %744
    %746 = vrot.lane.b32.xlu0 %v722, 2
    %v747 = vpop.permute.xlu0 %746
    %748 = vrot.lane.b32.xlu0 %v723, 2
    %v749 = vpop.permute.xlu0 %748
    %s750 = sld [smem:[#allocation3 + $0x24]]
    %v751 = vstv %s750
    %v752 = vmul.f32 %v751, %v743
    %v753 = vmul.f32 %v751, %v745
    %v754 = vmul.f32 %v751, %v747
    %v755 = vmul.f32 %v751, %v749
    %v756 = vadd.f32 %v716, %v752
    %v757 = vadd.f32 %v717, %v753
    %v758 = vadd.f32 %v718, %v754
    %v759 = vadd.f32 %v719, %v755
    %760 = vrot.lane.b32.xlu0 %v720, 1
    %v761 = vpop.permute.xlu0 %760
    %762 = vrot.lane.b32.xlu0 %v721, 1
    %v763 = vpop.permute.xlu0 %762
    %764 = vrot.lane.b32.xlu0 %v722, 1
    %v765 = vpop.permute.xlu0 %764
    %766 = vrot.lane.b32.xlu0 %v723, 1
    %v767 = vpop.permute.xlu0 %766
    %s768 = sld [smem:[#allocation3 + $0x25]]
    %v769 = vstv %s768
    %v770 = vmul.f32 %v769, %v761
    %v771 = vmul.f32 %v769, %v763
    %v772 = vmul.f32 %v769, %v765
    %v773 = vmul.f32 %v769, %v767
    %v774 = vadd.f32 %v738, %v770
    %v775 = vadd.f32 %v739, %v771
    %v776 = vadd.f32 %v740, %v772
    %v777 = vadd.f32 %v741, %v773
    %s778 = sld [smem:[#allocation3 + $0x26]]
    %v779 = vstv %s778
    %v780 = vmul.f32 %v779, %v720
    %v781 = vmul.f32 %v779, %v721
    %v782 = vmul.f32 %v779, %v722
    %v783 = vmul.f32 %v779, %v723
    %v784 = vadd.f32 %v756, %v780
    %v785 = vadd.f32 %v757, %v781
    %v786 = vadd.f32 %v758, %v782
    %v787 = vadd.f32 %v759, %v783
    %788 = vrot.lane.b32.xlu0 %v720, 127
    %v789 = vpop.permute.xlu0 %788
    %790 = vrot.lane.b32.xlu0 %v721, 127
    %v791 = vpop.permute.xlu0 %790
    %792 = vrot.lane.b32.xlu0 %v722, 127
    %v793 = vpop.permute.xlu0 %792
    %794 = vrot.lane.b32.xlu0 %v723, 127
    %v795 = vpop.permute.xlu0 %794
    %s796 = sld [smem:[#allocation3 + $0x27]]
    %v797 = vstv %s796
    %v798 = vmul.f32 %v797, %v789
    %v799 = vmul.f32 %v797, %v791
    %v800 = vmul.f32 %v797, %v793
    %v801 = vmul.f32 %v797, %v795
    %v802 = vadd.f32 %v774, %v798
    %v803 = vadd.f32 %v775, %v799
    %v804 = vadd.f32 %v776, %v800
    %v805 = vadd.f32 %v777, %v801
    %806 = vrot.lane.b32.xlu0 %v720, 126
    %v807 = vpop.permute.xlu0 %806
    %808 = vrot.lane.b32.xlu0 %v721, 126
    %v809 = vpop.permute.xlu0 %808
    %810 = vrot.lane.b32.xlu0 %v722, 126
    %v811 = vpop.permute.xlu0 %810
    %812 = vrot.lane.b32.xlu0 %v723, 126
    %v813 = vpop.permute.xlu0 %812
    %s814 = sld [smem:[#allocation3 + $0x28]]
    %v815 = vstv %s814
    %v816 = vmul.f32 %v815, %v807
    %v817 = vmul.f32 %v815, %v809
    %v818 = vmul.f32 %v815, %v811
    %v819 = vmul.f32 %v815, %v813
    %v820 = vadd.f32 %v784, %v816
    %v821 = vadd.f32 %v785, %v817
    %v822 = vadd.f32 %v786, %v818
    %v823 = vadd.f32 %v787, %v819
    %824 = vrot.lane.b32.xlu0 %v720, 125
    %v825 = vpop.permute.xlu0 %824
    %826 = vrot.lane.b32.xlu0 %v721, 125
    %v827 = vpop.permute.xlu0 %826
    %828 = vrot.lane.b32.xlu0 %v722, 125
    %v829 = vpop.permute.xlu0 %828
    %830 = vrot.lane.b32.xlu0 %v723, 125
    %v831 = vpop.permute.xlu0 %830
    %s832 = sld [smem:[#allocation3 + $0x29]]
    %v833 = vstv %s832
    %v834 = vmul.f32 %v833, %v825
    %v835 = vmul.f32 %v833, %v827
    %v836 = vmul.f32 %v833, %v829
    %v837 = vmul.f32 %v833, %v831
    %v838 = vadd.f32 %v802, %v834
    %v839 = vadd.f32 %v803, %v835
    %v840 = vadd.f32 %v804, %v836
    %v841 = vadd.f32 %v805, %v837
    %v842 = vld [vmem:[#allocation2 + $0xb] sm:$0xff]
    %v843 = vld [vmem:[#allocation2 + $0x13] sm:$0xff]
    %v844 = vld [vmem:[#allocation2 + $0x23] sm:$0xff]
    %v845 = vld [vmem:[#allocation2 + $0x2b] sm:$0xff]
    %846 = vrot.lane.b32.xlu0 %v842, 3
    %v847 = vpop.permute.xlu0 %846
    %848 = vrot.lane.b32.xlu0 %v843, 3
    %v849 = vpop.permute.xlu0 %848
    %850 = vrot.lane.b32.xlu0 %v844, 3
    %v851 = vpop.permute.xlu0 %850
    %852 = vrot.lane.b32.xlu0 %v845, 3
    %v853 = vpop.permute.xlu0 %852
    %s854 = sld [smem:[#allocation3 + $0x2a]]
    %v855 = vstv %s854
    %v856 = vmul.f32 %v855, %v847
    %v857 = vmul.f32 %v855, %v849
    %v858 = vmul.f32 %v855, %v851
    %v859 = vmul.f32 %v855, %v853
    %v860 = vadd.f32 %v820, %v856
    %v861 = vadd.f32 %v821, %v857
    %v862 = vadd.f32 %v822, %v858
    %v863 = vadd.f32 %v823, %v859
    %864 = vrot.lane.b32.xlu0 %v842, 2
    %v865 = vpop.permute.xlu0 %864
    %866 = vrot.lane.b32.xlu0 %v843, 2
    %v867 = vpop.permute.xlu0 %866
    %868 = vrot.lane.b32.xlu0 %v844, 2
    %v869 = vpop.permute.xlu0 %868
    %870 = vrot.lane.b32.xlu0 %v845, 2
    %v871 = vpop.permute.xlu0 %870
    %s872 = sld [smem:[#allocation3 + $0x2b]]
    %v873 = vstv %s872
    %v874 = vmul.f32 %v873, %v865
    %v875 = vmul.f32 %v873, %v867
    %v876 = vmul.f32 %v873, %v869
    %v877 = vmul.f32 %v873, %v871
    %v878 = vadd.f32 %v838, %v874
    %v879 = vadd.f32 %v839, %v875
    %v880 = vadd.f32 %v840, %v876
    %v881 = vadd.f32 %v841, %v877
    %882 = vrot.lane.b32.xlu0 %v842, 1
    %v883 = vpop.permute.xlu0 %882
    %884 = vrot.lane.b32.xlu0 %v843, 1
    %v885 = vpop.permute.xlu0 %884
    %886 = vrot.lane.b32.xlu0 %v844, 1
    %v887 = vpop.permute.xlu0 %886
    %888 = vrot.lane.b32.xlu0 %v845, 1
    %v889 = vpop.permute.xlu0 %888
    %s890 = sld [smem:[#allocation3 + $0x2c]]
    %v891 = vstv %s890
    %v892 = vmul.f32 %v891, %v883
    %v893 = vmul.f32 %v891, %v885
    %v894 = vmul.f32 %v891, %v887
    %v895 = vmul.f32 %v891, %v889
    %v896 = vadd.f32 %v860, %v892
    %v897 = vadd.f32 %v861, %v893
    %v898 = vadd.f32 %v862, %v894
    %v899 = vadd.f32 %v863, %v895
    %s900 = sld [smem:[#allocation3 + $0x2d]]
    %v901 = vstv %s900
    %v902 = vmul.f32 %v901, %v842
    %v903 = vmul.f32 %v901, %v843
    %v904 = vmul.f32 %v901, %v844
    %v905 = vmul.f32 %v901, %v845
    %v906 = vadd.f32 %v878, %v902
    %v907 = vadd.f32 %v879, %v903
    %v908 = vadd.f32 %v880, %v904
    %v909 = vadd.f32 %v881, %v905
    %910 = vrot.lane.b32.xlu0 %v842, 127
    %v911 = vpop.permute.xlu0 %910
    %912 = vrot.lane.b32.xlu0 %v843, 127
    %v913 = vpop.permute.xlu0 %912
    %914 = vrot.lane.b32.xlu0 %v844, 127
    %v915 = vpop.permute.xlu0 %914
    %916 = vrot.lane.b32.xlu0 %v845, 127
    %v917 = vpop.permute.xlu0 %916
    %s918 = sld [smem:[#allocation3 + $0x2e]]
    %v919 = vstv %s918
    %v920 = vmul.f32 %v919, %v911
    %v921 = vmul.f32 %v919, %v913
    %v922 = vmul.f32 %v919, %v915
    %v923 = vmul.f32 %v919, %v917
    %v924 = vadd.f32 %v896, %v920
    %v925 = vadd.f32 %v897, %v921
    %v926 = vadd.f32 %v898, %v922
    %v927 = vadd.f32 %v899, %v923
    %928 = vrot.lane.b32.xlu0 %v842, 126
    %v929 = vpop.permute.xlu0 %928
    %930 = vrot.lane.b32.xlu0 %v843, 126
    %v931 = vpop.permute.xlu0 %930
    %932 = vrot.lane.b32.xlu0 %v844, 126
    %v933 = vpop.permute.xlu0 %932
    %934 = vrot.lane.b32.xlu0 %v845, 126
    %v935 = vpop.permute.xlu0 %934
    %s936 = sld [smem:[#allocation3 + $0x2f]]
    %v937 = vstv %s936
    %v938 = vmul.f32 %v937, %v929
    %v939 = vmul.f32 %v937, %v931
    %v940 = vmul.f32 %v937, %v933
    %v941 = vmul.f32 %v937, %v935
    %v942 = vadd.f32 %v906, %v938
    %v943 = vadd.f32 %v907, %v939
    %v944 = vadd.f32 %v908, %v940
    %v945 = vadd.f32 %v909, %v941
    %946 = vrot.lane.b32.xlu0 %v842, 125
    %v947 = vpop.permute.xlu0 %946
    %948 = vrot.lane.b32.xlu0 %v843, 125
    %v949 = vpop.permute.xlu0 %948
    %950 = vrot.lane.b32.xlu0 %v844, 125
    %v951 = vpop.permute.xlu0 %950
    %952 = vrot.lane.b32.xlu0 %v845, 125
    %v953 = vpop.permute.xlu0 %952
    %s954 = sld [smem:[#allocation3 + $0x30]]
    %v955 = vstv %s954
    %v956 = vmul.f32 %v955, %v947
    %v957 = vmul.f32 %v955, %v949
    %v958 = vmul.f32 %v955, %v951
    %v959 = vmul.f32 %v955, %v953
    %v960 = vadd.f32 %v924, %v956
    %v961 = vadd.f32 %v925, %v957
    %v962 = vadd.f32 %v926, %v958
    %v963 = vadd.f32 %v927, %v959
    %v964 = vld [vmem:[%s103 + $0x5] sm:$0xff]
    %v965 = vld [vmem:[%s103 + $0xd] sm:$0xff]
    %v966 = vld [vmem:[%s103 + $0x1d] sm:$0xff]
    %v967 = vld [vmem:[%s103 + $0x25] sm:$0xff]
    %968 = vrot.lane.b32.xlu0 %v964, 3
    %v969 = vpop.permute.xlu0 %968
    %970 = vrot.lane.b32.xlu0 %v965, 3
    %v971 = vpop.permute.xlu0 %970
    %972 = vrot.lane.b32.xlu0 %v966, 3
    %v973 = vpop.permute.xlu0 %972
    %974 = vrot.lane.b32.xlu0 %v967, 3
    %v975 = vpop.permute.xlu0 %974
    %s976 = sld [smem:[#allocation3 + $0x31]]
    %v977 = vstv %s976
    %v978 = vmul.f32 %v977, %v969
    %v979 = vmul.f32 %v977, %v971
    %v980 = vmul.f32 %v977, %v973
    %v981 = vmul.f32 %v977, %v975
    %v982 = vadd.f32 %v942, %v978
    %v983 = vadd.f32 %v943, %v979
    %v984 = vadd.f32 %v944, %v980
    %v985 = vadd.f32 %v945, %v981
    %986 = vrot.lane.b32.xlu0 %v964, 2
    %v987 = vpop.permute.xlu0 %986
    %988 = vrot.lane.b32.xlu0 %v965, 2
    %v989 = vpop.permute.xlu0 %988
    %990 = vrot.lane.b32.xlu0 %v966, 2
    %v991 = vpop.permute.xlu0 %990
    %992 = vrot.lane.b32.xlu0 %v967, 2
    %v993 = vpop.permute.xlu0 %992
    %s994 = sld [smem:[#allocation3 + $0x32]]
    %v995 = vstv %s994
    %v996 = vmul.f32 %v995, %v987
    %v997 = vmul.f32 %v995, %v989
    %v998 = vmul.f32 %v995, %v991
    %v999 = vmul.f32 %v995, %v993
    %v1000 = vadd.f32 %v960, %v996
    %v1001 = vadd.f32 %v961, %v997
    %v1002 = vadd.f32 %v962, %v998
    %v1003 = vadd.f32 %v963, %v999
    %1004 = vrot.lane.b32.xlu0 %v964, 1
    %v1005 = vpop.permute.xlu0 %1004
    %1006 = vrot.lane.b32.xlu0 %v965, 1
    %v1007 = vpop.permute.xlu0 %1006
    %1008 = vrot.lane.b32.xlu0 %v966, 1
    %v1009 = vpop.permute.xlu0 %1008
    %1010 = vrot.lane.b32.xlu0 %v967, 1
    %v1011 = vpop.permute.xlu0 %1010
    %s1012 = sld [smem:[#allocation3 + $0x33]]
    %v1013 = vstv %s1012
    %v1014 = vmul.f32 %v1013, %v1005
    %v1015 = vmul.f32 %v1013, %v1007
    %v1016 = vmul.f32 %v1013, %v1009
    %v1017 = vmul.f32 %v1013, %v1011
    %v1018 = vadd.f32 %v982, %v1014
    %v1019 = vadd.f32 %v983, %v1015
    %v1020 = vadd.f32 %v984, %v1016
    %v1021 = vadd.f32 %v985, %v1017
    %s1022 = sld [smem:[#allocation3 + $0x34]]
    %v1023 = vstv %s1022
    %v1024 = vmul.f32 %v1023, %v964
    %v1025 = vmul.f32 %v1023, %v965
    %v1026 = vmul.f32 %v1023, %v966
    %v1027 = vmul.f32 %v1023, %v967
    %v1028 = vadd.f32 %v1000, %v1024
    %v1029 = vadd.f32 %v1001, %v1025
    %v1030 = vadd.f32 %v1002, %v1026
    %v1031 = vadd.f32 %v1003, %v1027
    %1032 = vrot.lane.b32.xlu0 %v964, 127
    %v1033 = vpop.permute.xlu0 %1032
    %1034 = vrot.lane.b32.xlu0 %v965, 127
    %v1035 = vpop.permute.xlu0 %1034
    %1036 = vrot.lane.b32.xlu0 %v966, 127
    %v1037 = vpop.permute.xlu0 %1036
    %1038 = vrot.lane.b32.xlu0 %v967, 127
    %v1039 = vpop.permute.xlu0 %1038
    %s1040 = sld [smem:[#allocation3 + $0x35]]
    %v1041 = vstv %s1040
    %v1042 = vmul.f32 %v1041, %v1033
    %v1043 = vmul.f32 %v1041, %v1035
    %v1044 = vmul.f32 %v1041, %v1037
    %v1045 = vmul.f32 %v1041, %v1039
    %v1046 = vadd.f32 %v1018, %v1042
    %v1047 = vadd.f32 %v1019, %v1043
    %v1048 = vadd.f32 %v1020, %v1044
    %v1049 = vadd.f32 %v1021, %v1045
    %1050 = vrot.lane.b32.xlu0 %v964, 126
    %v1051 = vpop.permute.xlu0 %1050
    %1052 = vrot.lane.b32.xlu0 %v965, 126
    %v1053 = vpop.permute.xlu0 %1052
    %1054 = vrot.lane.b32.xlu0 %v966, 126
    %v1055 = vpop.permute.xlu0 %1054
    %1056 = vrot.lane.b32.xlu0 %v967, 126
    %v1057 = vpop.permute.xlu0 %1056
    %s1058 = sld [smem:[#allocation3 + $0x36]]
    %v1059 = vstv %s1058
    %v1060 = vmul.f32 %v1059, %v1051
    %v1061 = vmul.f32 %v1059, %v1053
    %v1062 = vmul.f32 %v1059, %v1055
    %v1063 = vmul.f32 %v1059, %v1057
    %v1064 = vadd.f32 %v1028, %v1060
    %v1065 = vadd.f32 %v1029, %v1061
    %v1066 = vadd.f32 %v1030, %v1062
    %v1067 = vadd.f32 %v1031, %v1063
    %1068 = vrot.lane.b32.xlu0 %v964, 125
    %v1069 = vpop.permute.xlu0 %1068
    %1070 = vrot.lane.b32.xlu0 %v965, 125
    %v1071 = vpop.permute.xlu0 %1070
    %1072 = vrot.lane.b32.xlu0 %v966, 125
    %v1073 = vpop.permute.xlu0 %1072
    %1074 = vrot.lane.b32.xlu0 %v967, 125
    %v1075 = vpop.permute.xlu0 %1074
    %s1076 = sld [smem:[#allocation3 + $0x37]]
    %v1077 = vstv %s1076
    %v1078 = vmul.f32 %v1077, %v1069
    %v1079 = vmul.f32 %v1077, %v1071
    %v1080 = vmul.f32 %v1077, %v1073
    %v1081 = vmul.f32 %v1077, %v1075
    %v1082 = vadd.f32 %v1046, %v1078
    %v1083 = vadd.f32 %v1047, %v1079
    %v1084 = vadd.f32 %v1048, %v1080
    %v1085 = vadd.f32 %v1049, %v1081
    %v1086 = vld [vmem:[%s103 + $0x6] sm:$0xff]
    %v1087 = vld [vmem:[%s103 + $0xe] sm:$0xff]
    %v1088 = vld [vmem:[%s103 + $0x1e] sm:$0xff]
    %v1089 = vld [vmem:[%s103 + $0x26] sm:$0xff]
    %1090 = vrot.lane.b32.xlu0 %v1086, 3
    %v1091 = vpop.permute.xlu0 %1090
    %1092 = vrot.lane.b32.xlu0 %v1087, 3
    %v1093 = vpop.permute.xlu0 %1092
    %1094 = vrot.lane.b32.xlu0 %v1088, 3
    %v1095 = vpop.permute.xlu0 %1094
    %1096 = vrot.lane.b32.xlu0 %v1089, 3
    %v1097 = vpop.permute.xlu0 %1096
    %s1098 = sld [smem:[#allocation3 + $0x38]]
    %v1099 = vstv %s1098
    %v1100 = vmul.f32 %v1099, %v1091
    %v1101 = vmul.f32 %v1099, %v1093
    %v1102 = vmul.f32 %v1099, %v1095
    %v1103 = vmul.f32 %v1099, %v1097
    %v1104 = vadd.f32 %v1064, %v1100
    %v1105 = vadd.f32 %v1065, %v1101
    %v1106 = vadd.f32 %v1066, %v1102
    %v1107 = vadd.f32 %v1067, %v1103
    %1108 = vrot.lane.b32.xlu0 %v1086, 2
    %v1109 = vpop.permute.xlu0 %1108
    %1110 = vrot.lane.b32.xlu0 %v1087, 2
    %v1111 = vpop.permute.xlu0 %1110
    %1112 = vrot.lane.b32.xlu0 %v1088, 2
    %v1113 = vpop.permute.xlu0 %1112
    %1114 = vrot.lane.b32.xlu0 %v1089, 2
    %v1115 = vpop.permute.xlu0 %1114
    %s1116 = sld [smem:[#allocation3 + $0x39]]
    %v1117 = vstv %s1116
    %v1118 = vmul.f32 %v1117, %v1109
    %v1119 = vmul.f32 %v1117, %v1111
    %v1120 = vmul.f32 %v1117, %v1113
    %v1121 = vmul.f32 %v1117, %v1115
    %v1122 = vadd.f32 %v1082, %v1118
    %v1123 = vadd.f32 %v1083, %v1119
    %v1124 = vadd.f32 %v1084, %v1120
    %v1125 = vadd.f32 %v1085, %v1121
    %1126 = vrot.lane.b32.xlu0 %v1086, 1
    %v1127 = vpop.permute.xlu0 %1126
    %1128 = vrot.lane.b32.xlu0 %v1087, 1
    %v1129 = vpop.permute.xlu0 %1128
    %1130 = vrot.lane.b32.xlu0 %v1088, 1
    %v1131 = vpop.permute.xlu0 %1130
    %1132 = vrot.lane.b32.xlu0 %v1089, 1
    %v1133 = vpop.permute.xlu0 %1132
    %s1134 = sld [smem:[#allocation3 + $0x3a]]
    %v1135 = vstv %s1134
    %v1136 = vmul.f32 %v1135, %v1127
    %v1137 = vmul.f32 %v1135, %v1129
    %v1138 = vmul.f32 %v1135, %v1131
    %v1139 = vmul.f32 %v1135, %v1133
    %v1140 = vadd.f32 %v1104, %v1136
    %v1141 = vadd.f32 %v1105, %v1137
    %v1142 = vadd.f32 %v1106, %v1138
    %v1143 = vadd.f32 %v1107, %v1139
    %s1144 = sld [smem:[#allocation3 + $0x3b]]
    %v1145 = vstv %s1144
    %v1146 = vmul.f32 %v1145, %v1086
    %v1147 = vmul.f32 %v1145, %v1087
    %v1148 = vmul.f32 %v1145, %v1088
    %v1149 = vmul.f32 %v1145, %v1089
    %v1150 = vadd.f32 %v1122, %v1146
    %v1151 = vadd.f32 %v1123, %v1147
    %v1152 = vadd.f32 %v1124, %v1148
    %v1153 = vadd.f32 %v1125, %v1149
    %1154 = vrot.lane.b32.xlu0 %v1086, 127
    %v1155 = vpop.permute.xlu0 %1154
    %1156 = vrot.lane.b32.xlu0 %v1087, 127
    %v1157 = vpop.permute.xlu0 %1156
    %1158 = vrot.lane.b32.xlu0 %v1088, 127
    %v1159 = vpop.permute.xlu0 %1158
    %1160 = vrot.lane.b32.xlu0 %v1089, 127
    %v1161 = vpop.permute.xlu0 %1160
    %s1162 = sld [smem:[#allocation3 + $0x3c]]
    %v1163 = vstv %s1162
    %v1164 = vmul.f32 %v1163, %v1155
    %v1165 = vmul.f32 %v1163, %v1157
    %v1166 = vmul.f32 %v1163, %v1159
    %v1167 = vmul.f32 %v1163, %v1161
    %v1168 = vadd.f32 %v1140, %v1164
    %v1169 = vadd.f32 %v1141, %v1165
    %v1170 = vadd.f32 %v1142, %v1166
    %v1171 = vadd.f32 %v1143, %v1167
    %1172 = vrot.lane.b32.xlu0 %v1086, 126
    %v1173 = vpop.permute.xlu0 %1172
    %1174 = vrot.lane.b32.xlu0 %v1087, 126
    %v1175 = vpop.permute.xlu0 %1174
    %1176 = vrot.lane.b32.xlu0 %v1088, 126
    %v1177 = vpop.permute.xlu0 %1176
    %1178 = vrot.lane.b32.xlu0 %v1089, 126
    %v1179 = vpop.permute.xlu0 %1178
    %s1180 = sld [smem:[#allocation3 + $0x3d]]
    %v1181 = vstv %s1180
    %v1182 = vmul.f32 %v1181, %v1173
    %v1183 = vmul.f32 %v1181, %v1175
    %v1184 = vmul.f32 %v1181, %v1177
    %v1185 = vmul.f32 %v1181, %v1179
    %v1186 = vadd.f32 %v1150, %v1182
    %v1187 = vadd.f32 %v1151, %v1183
    %v1188 = vadd.f32 %v1152, %v1184
    %v1189 = vadd.f32 %v1153, %v1185
    %1190 = vrot.lane.b32.xlu0 %v1086, 125
    %v1191 = vpop.permute.xlu0 %1190
    %1192 = vrot.lane.b32.xlu0 %v1087, 125
    %v1193 = vpop.permute.xlu0 %1192
    %1194 = vrot.lane.b32.xlu0 %v1088, 125
    %v1195 = vpop.permute.xlu0 %1194
    %1196 = vrot.lane.b32.xlu0 %v1089, 125
    %v1197 = vpop.permute.xlu0 %1196
    %s1198 = sld [smem:[#allocation3 + $0x3e]]
    %v1199 = vstv %s1198
    %v1200 = vmul.f32 %v1199, %v1191
    %v1201 = vmul.f32 %v1199, %v1193
    %v1202 = vmul.f32 %v1199, %v1195
    %v1203 = vmul.f32 %v1199, %v1197
    %v1204 = vadd.f32 %v1168, %v1200
    %v1205 = vadd.f32 %v1169, %v1201
    %v1206 = vadd.f32 %v1170, %v1202
    %v1207 = vadd.f32 %v1171, %v1203
    %v1208 = vld [vmem:[%s103 + $0x7] sm:$0xff]
    %v1209 = vld [vmem:[%s103 + $0xf] sm:$0xff]
    %v1210 = vld [vmem:[%s103 + $0x1f] sm:$0xff]
    %v1211 = vld [vmem:[%s103 + $0x27] sm:$0xff]
    %1212 = vrot.lane.b32.xlu0 %v1208, 3
    %v1213 = vpop.permute.xlu0 %1212
    %1214 = vrot.lane.b32.xlu0 %v1209, 3
    %v1215 = vpop.permute.xlu0 %1214
    %1216 = vrot.lane.b32.xlu0 %v1210, 3
    %v1217 = vpop.permute.xlu0 %1216
    %1218 = vrot.lane.b32.xlu0 %v1211, 3
    %v1219 = vpop.permute.xlu0 %1218
    %s1220 = sld [smem:[#allocation3 + $0x3f]]
    %v1221 = vstv %s1220
    %v1222 = vmul.f32 %v1221, %v1213
    %v1223 = vmul.f32 %v1221, %v1215
    %v1224 = vmul.f32 %v1221, %v1217
    %v1225 = vmul.f32 %v1221, %v1219
    %v1226 = vadd.f32 %v1186, %v1222
    %v1227 = vadd.f32 %v1187, %v1223
    %v1228 = vadd.f32 %v1188, %v1224
    %v1229 = vadd.f32 %v1189, %v1225
    %1230 = vrot.lane.b32.xlu0 %v1208, 2
    %v1231 = vpop.permute.xlu0 %1230
    %1232 = vrot.lane.b32.xlu0 %v1209, 2
    %v1233 = vpop.permute.xlu0 %1232
    %1234 = vrot.lane.b32.xlu0 %v1210, 2
    %v1235 = vpop.permute.xlu0 %1234
    %1236 = vrot.lane.b32.xlu0 %v1211, 2
    %v1237 = vpop.permute.xlu0 %1236
    %s1238 = sld [smem:[#allocation3 + $0x40]]
    %v1239 = vstv %s1238
    %v1240 = vmul.f32 %v1239, %v1231
    %v1241 = vmul.f32 %v1239, %v1233
    %v1242 = vmul.f32 %v1239, %v1235
    %v1243 = vmul.f32 %v1239, %v1237
    %v1244 = vadd.f32 %v1204, %v1240
    %v1245 = vadd.f32 %v1205, %v1241
    %v1246 = vadd.f32 %v1206, %v1242
    %v1247 = vadd.f32 %v1207, %v1243
    %1248 = vrot.lane.b32.xlu0 %v1208, 1
    %v1249 = vpop.permute.xlu0 %1248
    %1250 = vrot.lane.b32.xlu0 %v1209, 1
    %v1251 = vpop.permute.xlu0 %1250
    %1252 = vrot.lane.b32.xlu0 %v1210, 1
    %v1253 = vpop.permute.xlu0 %1252
    %1254 = vrot.lane.b32.xlu0 %v1211, 1
    %v1255 = vpop.permute.xlu0 %1254
    %s1256 = sld [smem:[#allocation3 + $0x41]]
    %v1257 = vstv %s1256
    %v1258 = vmul.f32 %v1257, %v1249
    %v1259 = vmul.f32 %v1257, %v1251
    %v1260 = vmul.f32 %v1257, %v1253
    %v1261 = vmul.f32 %v1257, %v1255
    %v1262 = vadd.f32 %v1226, %v1258
    %v1263 = vadd.f32 %v1227, %v1259
    %v1264 = vadd.f32 %v1228, %v1260
    %v1265 = vadd.f32 %v1229, %v1261
    %s1266 = sld [smem:[#allocation3 + $0x42]]
    %v1267 = vstv %s1266
    %v1268 = vmul.f32 %v1267, %v1208
    %v1269 = vmul.f32 %v1267, %v1209
    %v1270 = vmul.f32 %v1267, %v1210
    %v1271 = vmul.f32 %v1267, %v1211
    %v1272 = vadd.f32 %v1244, %v1268
    %v1273 = vadd.f32 %v1245, %v1269
    %v1274 = vadd.f32 %v1246, %v1270
    %v1275 = vadd.f32 %v1247, %v1271
    %1276 = vrot.lane.b32.xlu0 %v1208, 127
    %v1277 = vpop.permute.xlu0 %1276
    %1278 = vrot.lane.b32.xlu0 %v1209, 127
    %v1279 = vpop.permute.xlu0 %1278
    %1280 = vrot.lane.b32.xlu0 %v1210, 127
    %v1281 = vpop.permute.xlu0 %1280
    %1282 = vrot.lane.b32.xlu0 %v1211, 127
    %v1283 = vpop.permute.xlu0 %1282
    %s1284 = sld [smem:[#allocation3 + $0x43]]
    %v1285 = vstv %s1284
    %v1286 = vmul.f32 %v1285, %v1277
    %v1287 = vmul.f32 %v1285, %v1279
    %v1288 = vmul.f32 %v1285, %v1281
    %v1289 = vmul.f32 %v1285, %v1283
    %v1290 = vadd.f32 %v1262, %v1286
    %v1291 = vadd.f32 %v1263, %v1287
    %v1292 = vadd.f32 %v1264, %v1288
    %v1293 = vadd.f32 %v1265, %v1289
    %1294 = vrot.lane.b32.xlu0 %v1208, 126
    %v1295 = vpop.permute.xlu0 %1294
    %1296 = vrot.lane.b32.xlu0 %v1209, 126
    %v1297 = vpop.permute.xlu0 %1296
    %1298 = vrot.lane.b32.xlu0 %v1210, 126
    %v1299 = vpop.permute.xlu0 %1298
    %1300 = vrot.lane.b32.xlu0 %v1211, 126
    %v1301 = vpop.permute.xlu0 %1300
    %s1302 = sld [smem:[#allocation3 + $0x44]]
    %v1303 = vstv %s1302
    %v1304 = vmul.f32 %v1303, %v1295
    %v1305 = vmul.f32 %v1303, %v1297
    %v1306 = vmul.f32 %v1303, %v1299
    %v1307 = vmul.f32 %v1303, %v1301
    %v1308 = vadd.f32 %v1272, %v1304
    %v1309 = vadd.f32 %v1273, %v1305
    %v1310 = vadd.f32 %v1274, %v1306
    %v1311 = vadd.f32 %v1275, %v1307
    %1312 = vrot.lane.b32.xlu0 %v1208, 125
    %v1313 = vpop.permute.xlu0 %1312
    %1314 = vrot.lane.b32.xlu0 %v1209, 125
    %v1315 = vpop.permute.xlu0 %1314
    %1316 = vrot.lane.b32.xlu0 %v1210, 125
    %v1317 = vpop.permute.xlu0 %1316
    %1318 = vrot.lane.b32.xlu0 %v1211, 125
    %v1319 = vpop.permute.xlu0 %1318
    %s1320 = sld [smem:[#allocation3 + $0x45]]
    %v1321 = vstv %s1320
    %v1322 = vmul.f32 %v1321, %v1313
    %v1323 = vmul.f32 %v1321, %v1315
    %v1324 = vmul.f32 %v1321, %v1317
    %v1325 = vmul.f32 %v1321, %v1319
    %v1326 = vadd.f32 %v1290, %v1322
    %v1327 = vadd.f32 %v1291, %v1323
    %v1328 = vadd.f32 %v1292, %v1324
    %v1329 = vadd.f32 %v1293, %v1325
    %v1330 = vld [vmem:[%s103 + $0x8] sm:$0xff]
    %v1331 = vld [vmem:[%s103 + $0x10] sm:$0xff]
    %v1332 = vld [vmem:[%s103 + $0x20] sm:$0xff]
    %v1333 = vld [vmem:[%s103 + $0x28] sm:$0xff]
    %1334 = vrot.lane.b32.xlu0 %v1330, 3
    %v1335 = vpop.permute.xlu0 %1334
    %1336 = vrot.lane.b32.xlu0 %v1331, 3
    %v1337 = vpop.permute.xlu0 %1336
    %1338 = vrot.lane.b32.xlu0 %v1332, 3
    %v1339 = vpop.permute.xlu0 %1338
    %1340 = vrot.lane.b32.xlu0 %v1333, 3
    %v1341 = vpop.permute.xlu0 %1340
    %s1342 = sld [smem:[#allocation3 + $0x46]]
    %v1343 = vstv %s1342
    %v1344 = vmul.f32 %v1343, %v1335
    %v1345 = vmul.f32 %v1343, %v1337
    %v1346 = vmul.f32 %v1343, %v1339
    %v1347 = vmul.f32 %v1343, %v1341
    %v1348 = vadd.f32 %v1308, %v1344
    %v1349 = vadd.f32 %v1309, %v1345
    %v1350 = vadd.f32 %v1310, %v1346
    %v1351 = vadd.f32 %v1311, %v1347
    %1352 = vrot.lane.b32.xlu0 %v1330, 2
    %v1353 = vpop.permute.xlu0 %1352
    %1354 = vrot.lane.b32.xlu0 %v1331, 2
    %v1355 = vpop.permute.xlu0 %1354
    %1356 = vrot.lane.b32.xlu0 %v1332, 2
    %v1357 = vpop.permute.xlu0 %1356
    %1358 = vrot.lane.b32.xlu0 %v1333, 2
    %v1359 = vpop.permute.xlu0 %1358
    %s1360 = sld [smem:[#allocation3 + $0x47]]
    %v1361 = vstv %s1360
    %v1362 = vmul.f32 %v1361, %v1353
    %v1363 = vmul.f32 %v1361, %v1355
    %v1364 = vmul.f32 %v1361, %v1357
    %v1365 = vmul.f32 %v1361, %v1359
    %v1366 = vadd.f32 %v1326, %v1362
    %v1367 = vadd.f32 %v1327, %v1363
    %v1368 = vadd.f32 %v1328, %v1364
    %v1369 = vadd.f32 %v1329, %v1365
    %1370 = vrot.lane.b32.xlu0 %v1330, 1
    %v1371 = vpop.permute.xlu0 %1370
    %1372 = vrot.lane.b32.xlu0 %v1331, 1
    %v1373 = vpop.permute.xlu0 %1372
    %1374 = vrot.lane.b32.xlu0 %v1332, 1
    %v1375 = vpop.permute.xlu0 %1374
    %1376 = vrot.lane.b32.xlu0 %v1333, 1
    %v1377 = vpop.permute.xlu0 %1376
    %s1378 = sld [smem:[#allocation3 + $0x48]]
    %v1379 = vstv %s1378
    %v1380 = vmul.f32 %v1379, %v1371
    %v1381 = vmul.f32 %v1379, %v1373
    %v1382 = vmul.f32 %v1379, %v1375
    %v1383 = vmul.f32 %v1379, %v1377
    %v1384 = vadd.f32 %v1348, %v1380
    %v1385 = vadd.f32 %v1349, %v1381
    %v1386 = vadd.f32 %v1350, %v1382
    %v1387 = vadd.f32 %v1351, %v1383
    %s1388 = sld [smem:[#allocation3 + $0x49]]
    %v1389 = vstv %s1388
    %v1390 = vmul.f32 %v1389, %v1330
    %v1391 = vmul.f32 %v1389, %v1331
    %v1392 = vmul.f32 %v1389, %v1332
    %v1393 = vmul.f32 %v1389, %v1333
    %v1394 = vadd.f32 %v1366, %v1390
    %v1395 = vadd.f32 %v1367, %v1391
    %v1396 = vadd.f32 %v1368, %v1392
    %v1397 = vadd.f32 %v1369, %v1393
    %1398 = vrot.lane.b32.xlu0 %v1330, 127
    %v1399 = vpop.permute.xlu0 %1398
    %1400 = vrot.lane.b32.xlu0 %v1331, 127
    %v1401 = vpop.permute.xlu0 %1400
    %1402 = vrot.lane.b32.xlu0 %v1332, 127
    %v1403 = vpop.permute.xlu0 %1402
    %1404 = vrot.lane.b32.xlu0 %v1333, 127
    %v1405 = vpop.permute.xlu0 %1404
    %s1406 = sld [smem:[#allocation3 + $0x4a]]
    %v1407 = vstv %s1406
    %v1408 = vmul.f32 %v1407, %v1399
    %v1409 = vmul.f32 %v1407, %v1401
    %v1410 = vmul.f32 %v1407, %v1403
    %v1411 = vmul.f32 %v1407, %v1405
    %v1412 = vadd.f32 %v1384, %v1408
    %v1413 = vadd.f32 %v1385, %v1409
    %v1414 = vadd.f32 %v1386, %v1410
    %v1415 = vadd.f32 %v1387, %v1411
    %1416 = vrot.lane.b32.xlu0 %v1330, 126
    %v1417 = vpop.permute.xlu0 %1416
    %1418 = vrot.lane.b32.xlu0 %v1331, 126
    %v1419 = vpop.permute.xlu0 %1418
    %1420 = vrot.lane.b32.xlu0 %v1332, 126
    %v1421 = vpop.permute.xlu0 %1420
    %1422 = vrot.lane.b32.xlu0 %v1333, 126
    %v1423 = vpop.permute.xlu0 %1422
    %s1424 = sld [smem:[#allocation3 + $0x4b]]
    %v1425 = vstv %s1424
    %v1426 = vmul.f32 %v1425, %v1417
    %v1427 = vmul.f32 %v1425, %v1419
    %v1428 = vmul.f32 %v1425, %v1421
    %v1429 = vmul.f32 %v1425, %v1423
    %v1430 = vadd.f32 %v1394, %v1426
    %v1431 = vadd.f32 %v1395, %v1427
    %v1432 = vadd.f32 %v1396, %v1428
    %v1433 = vadd.f32 %v1397, %v1429
    %1434 = vrot.lane.b32.xlu0 %v1330, 125
    %v1435 = vpop.permute.xlu0 %1434
    %1436 = vrot.lane.b32.xlu0 %v1331, 125
    %v1437 = vpop.permute.xlu0 %1436
    %1438 = vrot.lane.b32.xlu0 %v1332, 125
    %v1439 = vpop.permute.xlu0 %1438
    %1440 = vrot.lane.b32.xlu0 %v1333, 125
    %v1441 = vpop.permute.xlu0 %1440
    %s1442 = sld [smem:[#allocation3 + $0x4c]]
    %v1443 = vstv %s1442
    %v1444 = vmul.f32 %v1443, %v1435
    %v1445 = vmul.f32 %v1443, %v1437
    %v1446 = vmul.f32 %v1443, %v1439
    %v1447 = vmul.f32 %v1443, %v1441
    %v1448 = vadd.f32 %v1412, %v1444
    %v1449 = vadd.f32 %v1413, %v1445
    %v1450 = vadd.f32 %v1414, %v1446
    %v1451 = vadd.f32 %v1415, %v1447
    %v1452 = vld [vmem:[%s103 + $0x9] sm:$0xff]
    %v1453 = vld [vmem:[%s103 + $0x11] sm:$0xff]
    %v1454 = vld [vmem:[%s103 + $0x21] sm:$0xff]
    %v1455 = vld [vmem:[%s103 + $0x29] sm:$0xff]
    %1456 = vrot.lane.b32.xlu0 %v1452, 3
    %v1457 = vpop.permute.xlu0 %1456
    %1458 = vrot.lane.b32.xlu0 %v1453, 3
    %v1459 = vpop.permute.xlu0 %1458
    %1460 = vrot.lane.b32.xlu0 %v1454, 3
    %v1461 = vpop.permute.xlu0 %1460
    %1462 = vrot.lane.b32.xlu0 %v1455, 3
    %v1463 = vpop.permute.xlu0 %1462
    %s1464 = sld [smem:[#allocation3 + $0x4d]]
    %v1465 = vstv %s1464
    %v1466 = vmul.f32 %v1465, %v1457
    %v1467 = vmul.f32 %v1465, %v1459
    %v1468 = vmul.f32 %v1465, %v1461
    %v1469 = vmul.f32 %v1465, %v1463
    %v1470 = vadd.f32 %v1430, %v1466
    %v1471 = vadd.f32 %v1431, %v1467
    %v1472 = vadd.f32 %v1432, %v1468
    %v1473 = vadd.f32 %v1433, %v1469
    %1474 = vrot.lane.b32.xlu0 %v1452, 2
    %v1475 = vpop.permute.xlu0 %1474
    %1476 = vrot.lane.b32.xlu0 %v1453, 2
    %v1477 = vpop.permute.xlu0 %1476
    %1478 = vrot.lane.b32.xlu0 %v1454, 2
    %v1479 = vpop.permute.xlu0 %1478
    %1480 = vrot.lane.b32.xlu0 %v1455, 2
    %v1481 = vpop.permute.xlu0 %1480
    %s1482 = sld [smem:[#allocation3 + $0x4e]]
    %v1483 = vstv %s1482
    %v1484 = vmul.f32 %v1483, %v1475
    %v1485 = vmul.f32 %v1483, %v1477
    %v1486 = vmul.f32 %v1483, %v1479
    %v1487 = vmul.f32 %v1483, %v1481
    %v1488 = vadd.f32 %v1448, %v1484
    %v1489 = vadd.f32 %v1449, %v1485
    %v1490 = vadd.f32 %v1450, %v1486
    %v1491 = vadd.f32 %v1451, %v1487
    %1492 = vrot.lane.b32.xlu0 %v1452, 1
    %v1493 = vpop.permute.xlu0 %1492
    %1494 = vrot.lane.b32.xlu0 %v1453, 1
    %v1495 = vpop.permute.xlu0 %1494
    %1496 = vrot.lane.b32.xlu0 %v1454, 1
    %v1497 = vpop.permute.xlu0 %1496
    %1498 = vrot.lane.b32.xlu0 %v1455, 1
    %v1499 = vpop.permute.xlu0 %1498
    %s1500 = sld [smem:[#allocation3 + $0x4f]]
    %v1501 = vstv %s1500
    %v1502 = vmul.f32 %v1501, %v1493
    %v1503 = vmul.f32 %v1501, %v1495
    %v1504 = vmul.f32 %v1501, %v1497
    %v1505 = vmul.f32 %v1501, %v1499
    %v1506 = vadd.f32 %v1470, %v1502
    %v1507 = vadd.f32 %v1471, %v1503
    %v1508 = vadd.f32 %v1472, %v1504
    %v1509 = vadd.f32 %v1473, %v1505
    %s1510 = sld [smem:[#allocation3 + $0x50]]
    %v1511 = vstv %s1510
    %v1512 = vmul.f32 %v1511, %v1452
    %v1513 = vmul.f32 %v1511, %v1453
    %v1514 = vmul.f32 %v1511, %v1454
    %v1515 = vmul.f32 %v1511, %v1455
    %v1516 = vadd.f32 %v1488, %v1512
    %v1517 = vadd.f32 %v1489, %v1513
    %v1518 = vadd.f32 %v1490, %v1514
    %v1519 = vadd.f32 %v1491, %v1515
    %1520 = vrot.lane.b32.xlu0 %v1452, 127
    %v1521 = vpop.permute.xlu0 %1520
    %1522 = vrot.lane.b32.xlu0 %v1453, 127
    %v1523 = vpop.permute.xlu0 %1522
    %1524 = vrot.lane.b32.xlu0 %v1454, 127
    %v1525 = vpop.permute.xlu0 %1524
    %1526 = vrot.lane.b32.xlu0 %v1455, 127
    %v1527 = vpop.permute.xlu0 %1526
    %s1528 = sld [smem:[#allocation3 + $0x51]]
    %v1529 = vstv %s1528
    %v1530 = vmul.f32 %v1529, %v1521
    %v1531 = vmul.f32 %v1529, %v1523
    %v1532 = vmul.f32 %v1529, %v1525
    %v1533 = vmul.f32 %v1529, %v1527
    %v1534 = vadd.f32 %v1506, %v1530
    %v1535 = vadd.f32 %v1507, %v1531
    %v1536 = vadd.f32 %v1508, %v1532
    %v1537 = vadd.f32 %v1509, %v1533
    %1538 = vrot.lane.b32.xlu0 %v1452, 126
    %v1539 = vpop.permute.xlu0 %1538
    %1540 = vrot.lane.b32.xlu0 %v1453, 126
    %v1541 = vpop.permute.xlu0 %1540
    %1542 = vrot.lane.b32.xlu0 %v1454, 126
    %v1543 = vpop.permute.xlu0 %1542
    %1544 = vrot.lane.b32.xlu0 %v1455, 126
    %v1545 = vpop.permute.xlu0 %1544
    %s1546 = sld [smem:[#allocation3 + $0x52]]
    %v1547 = vstv %s1546
    %v1548 = vmul.f32 %v1547, %v1539
    %v1549 = vmul.f32 %v1547, %v1541
    %v1550 = vmul.f32 %v1547, %v1543
    %v1551 = vmul.f32 %v1547, %v1545
    %v1552 = vadd.f32 %v1516, %v1548
    %v1553 = vadd.f32 %v1517, %v1549
    %v1554 = vadd.f32 %v1518, %v1550
    %v1555 = vadd.f32 %v1519, %v1551
    %1556 = vrot.lane.b32.xlu0 %v1452, 125
    %v1557 = vpop.permute.xlu0 %1556
    %1558 = vrot.lane.b32.xlu0 %v1453, 125
    %v1559 = vpop.permute.xlu0 %1558
    %1560 = vrot.lane.b32.xlu0 %v1454, 125
    %v1561 = vpop.permute.xlu0 %1560
    %1562 = vrot.lane.b32.xlu0 %v1455, 125
    %v1563 = vpop.permute.xlu0 %1562
    %s1564 = sld [smem:[#allocation3 + $0x53]]
    %v1565 = vstv %s1564
    %v1566 = vmul.f32 %v1565, %v1557
    %v1567 = vmul.f32 %v1565, %v1559
    %v1568 = vmul.f32 %v1565, %v1561
    %v1569 = vmul.f32 %v1565, %v1563
    %v1570 = vadd.f32 %v1534, %v1566
    %v1571 = vadd.f32 %v1535, %v1567
    %v1572 = vadd.f32 %v1536, %v1568
    %v1573 = vadd.f32 %v1537, %v1569
    %v1574 = vld [vmem:[%s103 + $0xa] sm:$0xff]
    %v1575 = vld [vmem:[%s103 + $0x12] sm:$0xff]
    %v1576 = vld [vmem:[%s103 + $0x22] sm:$0xff]
    %v1577 = vld [vmem:[%s103 + $0x2a] sm:$0xff]
    %1578 = vrot.lane.b32.xlu0 %v1574, 3
    %v1579 = vpop.permute.xlu0 %1578
    %1580 = vrot.lane.b32.xlu0 %v1575, 3
    %v1581 = vpop.permute.xlu0 %1580
    %1582 = vrot.lane.b32.xlu0 %v1576, 3
    %v1583 = vpop.permute.xlu0 %1582
    %1584 = vrot.lane.b32.xlu0 %v1577, 3
    %v1585 = vpop.permute.xlu0 %1584
    %s1586 = sld [smem:[#allocation3 + $0x54]]
    %v1587 = vstv %s1586
    %v1588 = vmul.f32 %v1587, %v1579
    %v1589 = vmul.f32 %v1587, %v1581
    %v1590 = vmul.f32 %v1587, %v1583
    %v1591 = vmul.f32 %v1587, %v1585
    %v1592 = vadd.f32 %v1552, %v1588
    %v1593 = vadd.f32 %v1553, %v1589
    %v1594 = vadd.f32 %v1554, %v1590
    %v1595 = vadd.f32 %v1555, %v1591
    %1596 = vrot.lane.b32.xlu0 %v1574, 2
    %v1597 = vpop.permute.xlu0 %1596
    %1598 = vrot.lane.b32.xlu0 %v1575, 2
    %v1599 = vpop.permute.xlu0 %1598
    %1600 = vrot.lane.b32.xlu0 %v1576, 2
    %v1601 = vpop.permute.xlu0 %1600
    %1602 = vrot.lane.b32.xlu0 %v1577, 2
    %v1603 = vpop.permute.xlu0 %1602
    %s1604 = sld [smem:[#allocation3 + $0x55]]
    %v1605 = vstv %s1604
    %v1606 = vmul.f32 %v1605, %v1597
    %v1607 = vmul.f32 %v1605, %v1599
    %v1608 = vmul.f32 %v1605, %v1601
    %v1609 = vmul.f32 %v1605, %v1603
    %v1610 = vadd.f32 %v1570, %v1606
    %v1611 = vadd.f32 %v1571, %v1607
    %v1612 = vadd.f32 %v1572, %v1608
    %v1613 = vadd.f32 %v1573, %v1609
    %1614 = vrot.lane.b32.xlu0 %v1574, 1
    %v1615 = vpop.permute.xlu0 %1614
    %1616 = vrot.lane.b32.xlu0 %v1575, 1
    %v1617 = vpop.permute.xlu0 %1616
    %1618 = vrot.lane.b32.xlu0 %v1576, 1
    %v1619 = vpop.permute.xlu0 %1618
    %1620 = vrot.lane.b32.xlu0 %v1577, 1
    %v1621 = vpop.permute.xlu0 %1620
    %s1622 = sld [smem:[#allocation3 + $0x56]]
    %v1623 = vstv %s1622
    %v1624 = vmul.f32 %v1623, %v1615
    %v1625 = vmul.f32 %v1623, %v1617
    %v1626 = vmul.f32 %v1623, %v1619
    %v1627 = vmul.f32 %v1623, %v1621
    %v1628 = vadd.f32 %v1592, %v1624
    %v1629 = vadd.f32 %v1593, %v1625
    %v1630 = vadd.f32 %v1594, %v1626
    %v1631 = vadd.f32 %v1595, %v1627
    %s1632 = sld [smem:[#allocation3 + $0x57]]
    %v1633 = vstv %s1632
    %v1634 = vmul.f32 %v1633, %v1574
    %v1635 = vmul.f32 %v1633, %v1575
    %v1636 = vmul.f32 %v1633, %v1576
    %v1637 = vmul.f32 %v1633, %v1577
    %v1638 = vadd.f32 %v1610, %v1634
    %v1639 = vadd.f32 %v1611, %v1635
    %v1640 = vadd.f32 %v1612, %v1636
    %v1641 = vadd.f32 %v1613, %v1637
    %1642 = vrot.lane.b32.xlu0 %v1574, 127
    %v1643 = vpop.permute.xlu0 %1642
    %1644 = vrot.lane.b32.xlu0 %v1575, 127
    %v1645 = vpop.permute.xlu0 %1644
    %1646 = vrot.lane.b32.xlu0 %v1576, 127
    %v1647 = vpop.permute.xlu0 %1646
    %1648 = vrot.lane.b32.xlu0 %v1577, 127
    %v1649 = vpop.permute.xlu0 %1648
    %s1650 = sld [smem:[#allocation3 + $0x58]]
    %v1651 = vstv %s1650
    %v1652 = vmul.f32 %v1651, %v1643
    %v1653 = vmul.f32 %v1651, %v1645
    %v1654 = vmul.f32 %v1651, %v1647
    %v1655 = vmul.f32 %v1651, %v1649
    %v1656 = vadd.f32 %v1628, %v1652
    %v1657 = vadd.f32 %v1629, %v1653
    %v1658 = vadd.f32 %v1630, %v1654
    %v1659 = vadd.f32 %v1631, %v1655
    %1660 = vrot.lane.b32.xlu0 %v1574, 126
    %v1661 = vpop.permute.xlu0 %1660
    %1662 = vrot.lane.b32.xlu0 %v1575, 126
    %v1663 = vpop.permute.xlu0 %1662
    %1664 = vrot.lane.b32.xlu0 %v1576, 126
    %v1665 = vpop.permute.xlu0 %1664
    %1666 = vrot.lane.b32.xlu0 %v1577, 126
    %v1667 = vpop.permute.xlu0 %1666
    %s1668 = sld [smem:[#allocation3 + $0x59]]
    %v1669 = vstv %s1668
    %v1670 = vmul.f32 %v1669, %v1661
    %v1671 = vmul.f32 %v1669, %v1663
    %v1672 = vmul.f32 %v1669, %v1665
    %v1673 = vmul.f32 %v1669, %v1667
    %v1674 = vadd.f32 %v1638, %v1670
    %v1675 = vadd.f32 %v1639, %v1671
    %v1676 = vadd.f32 %v1640, %v1672
    %v1677 = vadd.f32 %v1641, %v1673
    %1678 = vrot.lane.b32.xlu0 %v1574, 125
    %v1679 = vpop.permute.xlu0 %1678
    %1680 = vrot.lane.b32.xlu0 %v1575, 125
    %v1681 = vpop.permute.xlu0 %1680
    %1682 = vrot.lane.b32.xlu0 %v1576, 125
    %v1683 = vpop.permute.xlu0 %1682
    %1684 = vrot.lane.b32.xlu0 %v1577, 125
    %v1685 = vpop.permute.xlu0 %1684
    %s1686 = sld [smem:[#allocation3 + $0x5a]]
    %v1687 = vstv %s1686
    %v1688 = vmul.f32 %v1687, %v1679
    %v1689 = vmul.f32 %v1687, %v1681
    %v1690 = vmul.f32 %v1687, %v1683
    %v1691 = vmul.f32 %v1687, %v1685
    %v1692 = vadd.f32 %v1656, %v1688
    %v1693 = vadd.f32 %v1657, %v1689
    %v1694 = vadd.f32 %v1658, %v1690
    %v1695 = vadd.f32 %v1659, %v1691
    %v1696 = vld [vmem:[%s103 + $0xb] sm:$0xff]
    %v1697 = vld [vmem:[%s103 + $0x13] sm:$0xff]
    %v1698 = vld [vmem:[%s103 + $0x23] sm:$0xff]
    %v1699 = vld [vmem:[%s103 + $0x2b] sm:$0xff]
    %1700 = vrot.lane.b32.xlu0 %v1696, 3
    %v1701 = vpop.permute.xlu0 %1700
    %1702 = vrot.lane.b32.xlu0 %v1697, 3
    %v1703 = vpop.permute.xlu0 %1702
    %1704 = vrot.lane.b32.xlu0 %v1698, 3
    %v1705 = vpop.permute.xlu0 %1704
    %1706 = vrot.lane.b32.xlu0 %v1699, 3
    %v1707 = vpop.permute.xlu0 %1706
    %s1708 = sld [smem:[#allocation3 + $0x5b]]
    %v1709 = vstv %s1708
    %v1710 = vmul.f32 %v1709, %v1701
    %v1711 = vmul.f32 %v1709, %v1703
    %v1712 = vmul.f32 %v1709, %v1705
    %v1713 = vmul.f32 %v1709, %v1707
    %v1714 = vadd.f32 %v1674, %v1710
    %v1715 = vadd.f32 %v1675, %v1711
    %v1716 = vadd.f32 %v1676, %v1712
    %v1717 = vadd.f32 %v1677, %v1713
    %1718 = vrot.lane.b32.xlu0 %v1696, 2
    %v1719 = vpop.permute.xlu0 %1718
    %1720 = vrot.lane.b32.xlu0 %v1697, 2
    %v1721 = vpop.permute.xlu0 %1720
    %1722 = vrot.lane.b32.xlu0 %v1698, 2
    %v1723 = vpop.permute.xlu0 %1722
    %1724 = vrot.lane.b32.xlu0 %v1699, 2
    %v1725 = vpop.permute.xlu0 %1724
    %s1726 = sld [smem:[#allocation3 + $0x5c]]
    %v1727 = vstv %s1726
    %v1728 = vmul.f32 %v1727, %v1719
    %v1729 = vmul.f32 %v1727, %v1721
    %v1730 = vmul.f32 %v1727, %v1723
    %v1731 = vmul.f32 %v1727, %v1725
    %v1732 = vadd.f32 %v1692, %v1728
    %v1733 = vadd.f32 %v1693, %v1729
    %v1734 = vadd.f32 %v1694, %v1730
    %v1735 = vadd.f32 %v1695, %v1731
    %1736 = vrot.lane.b32.xlu0 %v1696, 1
    %v1737 = vpop.permute.xlu0 %1736
    %1738 = vrot.lane.b32.xlu0 %v1697, 1
    %v1739 = vpop.permute.xlu0 %1738
    %1740 = vrot.lane.b32.xlu0 %v1698, 1
    %v1741 = vpop.permute.xlu0 %1740
    %1742 = vrot.lane.b32.xlu0 %v1699, 1
    %v1743 = vpop.permute.xlu0 %1742
    %s1744 = sld [smem:[#allocation3 + $0x5d]]
    %v1745 = vstv %s1744
    %v1746 = vmul.f32 %v1745, %v1737
    %v1747 = vmul.f32 %v1745, %v1739
    %v1748 = vmul.f32 %v1745, %v1741
    %v1749 = vmul.f32 %v1745, %v1743
    %v1750 = vadd.f32 %v1714, %v1746
    %v1751 = vadd.f32 %v1715, %v1747
    %v1752 = vadd.f32 %v1716, %v1748
    %v1753 = vadd.f32 %v1717, %v1749
    %s1754 = sld [smem:[#allocation3 + $0x5e]]
    %v1755 = vstv %s1754
    %v1756 = vmul.f32 %v1755, %v1696
    %v1757 = vmul.f32 %v1755, %v1697
    %v1758 = vmul.f32 %v1755, %v1698
    %v1759 = vmul.f32 %v1755, %v1699
    %v1760 = vadd.f32 %v1732, %v1756
    %v1761 = vadd.f32 %v1733, %v1757
    %v1762 = vadd.f32 %v1734, %v1758
    %v1763 = vadd.f32 %v1735, %v1759
    %1764 = vrot.lane.b32.xlu0 %v1696, 127
    %v1765 = vpop.permute.xlu0 %1764
    %1766 = vrot.lane.b32.xlu0 %v1697, 127
    %v1767 = vpop.permute.xlu0 %1766
    %1768 = vrot.lane.b32.xlu0 %v1698, 127
    %v1769 = vpop.permute.xlu0 %1768
    %1770 = vrot.lane.b32.xlu0 %v1699, 127
    %v1771 = vpop.permute.xlu0 %1770
    %s1772 = sld [smem:[#allocation3 + $0x5f]]
    %v1773 = vstv %s1772
    %v1774 = vmul.f32 %v1773, %v1765
    %v1775 = vmul.f32 %v1773, %v1767
    %v1776 = vmul.f32 %v1773, %v1769
    %v1777 = vmul.f32 %v1773, %v1771
    %v1778 = vadd.f32 %v1750, %v1774
    %v1779 = vadd.f32 %v1751, %v1775
    %v1780 = vadd.f32 %v1752, %v1776
    %v1781 = vadd.f32 %v1753, %v1777
    %1782 = vrot.lane.b32.xlu0 %v1696, 126
    %v1783 = vpop.permute.xlu0 %1782
    %1784 = vrot.lane.b32.xlu0 %v1697, 126
    %v1785 = vpop.permute.xlu0 %1784
    %1786 = vrot.lane.b32.xlu0 %v1698, 126
    %v1787 = vpop.permute.xlu0 %1786
    %1788 = vrot.lane.b32.xlu0 %v1699, 126
    %v1789 = vpop.permute.xlu0 %1788
    %s1790 = sld [smem:[#allocation3 + $0x60]]
    %v1791 = vstv %s1790
    %v1792 = vmul.f32 %v1791, %v1783
    %v1793 = vmul.f32 %v1791, %v1785
    %v1794 = vmul.f32 %v1791, %v1787
    %v1795 = vmul.f32 %v1791, %v1789
    %v1796 = vadd.f32 %v1760, %v1792
    %v1797 = vadd.f32 %v1761, %v1793
    %v1798 = vadd.f32 %v1762, %v1794
    %v1799 = vadd.f32 %v1763, %v1795
    %1800 = vrot.lane.b32.xlu0 %v1696, 125
    %v1801 = vpop.permute.xlu0 %1800
    %1802 = vrot.lane.b32.xlu0 %v1697, 125
    %v1803 = vpop.permute.xlu0 %1802
    %1804 = vrot.lane.b32.xlu0 %v1698, 125
    %v1805 = vpop.permute.xlu0 %1804
    %1806 = vrot.lane.b32.xlu0 %v1699, 125
    %v1807 = vpop.permute.xlu0 %1806
    %s1808 = sld [smem:[#allocation3 + $0x61]]
    %v1809 = vstv %s1808
    %v1810 = vmul.f32 %v1809, %v1801
    %v1811 = vmul.f32 %v1809, %v1803
    %v1812 = vmul.f32 %v1809, %v1805
    %v1813 = vmul.f32 %v1809, %v1807
    %v1814 = vadd.f32 %v1778, %v1810
    %v1815 = vadd.f32 %v1779, %v1811
    %v1816 = vadd.f32 %v1780, %v1812
    %v1817 = vadd.f32 %v1781, %v1813
    %v1818 = vadd.f32 %v1796, %v1814
    %v1819 = vadd.f32 %v1797, %v1815
    %v1820 = vadd.f32 %v1798, %v1816
    %v1821 = vadd.f32 %v1799, %v1817
    %v1822 = vxor.u32 %v1818, 2147483648
    %v1823 = vxor.u32 %v1819, 2147483648
    %v1824 = vmul.f32 %v1822, 1.442695
    %v1825 = vpow.pop %v1824
    %v1826 = vmul.f32 %v1823, 1.442695
    %v1827 = vpow.pop %v1826
    %v1828 = vadd.f32 %v1825, 1.0
    %v1829 = vadd.f32 %v1827, 1.0
    %v1830 = vrcp.pop %v1828
    %v1831 = vmul.f32 %v1828, %v1830
    %v1832 = vsub.f32 1.0, %v1831
    %v1833 = vmul.f32 %v1830, %v1832
    %v1834 = vadd.f32 %v1830, %v1833
    %vm1835 = vweird.f32 %v1828
    %vm1836 = vweird.f32 %v1830
    %vm1837 = vmor %vm1835, %vm1836
    %v1838 = vsel %vm1837, %v1830, %v1834
    %v1839 = vand.u32 2147483647, %v1828
    %vm1840 = vcmp.eq.f32.partialorder %v1839, 8.507059e+37
    %v1841 = vand.u32 %v1828, 2147483648
    %v1842 = vor.u32 1.1754944e-38, %v1841
    %v1843 = vsel %vm1840, %v1842, %v1838
    %v1844 = vmul.f32 1.0, %v1843
    %v1845 = vrcp.pop %v1829
    %v1846 = vmul.f32 %v1829, %v1845
    %v1847 = vsub.f32 1.0, %v1846
    %v1848 = vmul.f32 %v1845, %v1847
    %v1849 = vadd.f32 %v1845, %v1848
    %vm1850 = vweird.f32 %v1829
    %vm1851 = vweird.f32 %v1845
    %vm1852 = vmor %vm1850, %vm1851
    %v1853 = vsel %vm1852, %v1845, %v1849
    %v1854 = vand.u32 2147483647, %v1829
    %vm1855 = vcmp.eq.f32.partialorder %v1854, 8.507059e+37
    %v1856 = vand.u32 %v1829, 2147483648
    %v1857 = vor.u32 1.1754944e-38, %v1856
    %v1858 = vsel %vm1855, %v1857, %v1853
    %v1859 = vmul.f32 1.0, %v1858
    %1860 = vst [vmem:[#allocation8] sm:$0xff] %v1844
    %1861 = vst [vmem:[#allocation8 + $0x8] sm:$0xff] %v1859
    %v1862 = vxor.u32 %v1820, 2147483648
    %v1863 = vxor.u32 %v1821, 2147483648
    %v1864 = vmul.f32 %v1862, 1.442695
    %v1865 = vpow.pop %v1864
    %v1866 = vmul.f32 %v1863, 1.442695
    %v1867 = vpow.pop %v1866
    %v1868 = vadd.f32 %v1865, 1.0
    %v1869 = vadd.f32 %v1867, 1.0
    %v1870 = vrcp.pop %v1868
    %v1871 = vmul.f32 %v1868, %v1870
    %v1872 = vsub.f32 1.0, %v1871
    %v1873 = vmul.f32 %v1870, %v1872
    %v1874 = vadd.f32 %v1870, %v1873
    %vm1875 = vweird.f32 %v1868
    %vm1876 = vweird.f32 %v1870
    %vm1877 = vmor %vm1875, %vm1876
    %v1878 = vsel %vm1877, %v1870, %v1874
    %v1879 = vand.u32 2147483647, %v1868
    %vm1880 = vcmp.eq.f32.partialorder %v1879, 8.507059e+37
    %v1881 = vand.u32 %v1868, 2147483648
    %v1882 = vor.u32 1.1754944e-38, %v1881
    %v1883 = vsel %vm1880, %v1882, %v1878
    %v1884 = vmul.f32 1.0, %v1883
    %v1885 = vrcp.pop %v1869
    %v1886 = vmul.f32 %v1869, %v1885
    %v1887 = vsub.f32 1.0, %v1886
    %v1888 = vmul.f32 %v1885, %v1887
    %v1889 = vadd.f32 %v1885, %v1888
    %vm1890 = vweird.f32 %v1869
    %vm1891 = vweird.f32 %v1885
    %vm1892 = vmor %vm1890, %vm1891
    %v1893 = vsel %vm1892, %v1885, %v1889
    %v1894 = vand.u32 2147483647, %v1869
    %vm1895 = vcmp.eq.f32.partialorder %v1894, 8.507059e+37
    %v1896 = vand.u32 %v1869, 2147483648
    %v1897 = vor.u32 1.1754944e-38, %v1896
    %v1898 = vsel %vm1895, %v1897, %v1893
    %v1899 = vmul.f32 1.0, %v1898
    %s1900 = scalar_lea.vmem [#allocation8], 16
    %1901 = vst [vmem:[%s1900] sm:$0xff] %v1884
    %1902 = vst [vmem:[%s1900 + $0x8] sm:$0xff] %v1899
    // Predicated region
    $region18: #{tpu_custom_call.1} parent=1 // pred_check
      _
    $region19: #{tpu_custom_call.1} parent=1 // pred_check_branch
      %1904 = sbr.rel (0) target = $region21
    $region20: #{tpu_custom_call.1} parent=1 // pred_region
      %1906 = vsyncadd [#allocation5], 0
      %s1907 = sshll.u32 [#allocation8], 4
      %s1908 = int_to_ptr.vmem [resolvable:$true] %s1907
      %s1909 = sshll.u32 %s2, 4
      %s1910 = int_to_ptr.hbm [resolvable:$true] %s1909
      %1915 = dma.vmem_to_hbm [thread:$0]  %s1908, 512, %s1910, [#allocation5], 128, 128, 8
    $region21: #{tpu_custom_call.1} parent=1 // pred_fallthru
      _
    // Predicated region
    $region22: #{tpu_custom_call.1} parent=1 // pred_check
      _
    $region23: #{tpu_custom_call.1} parent=1 // pred_check_branch
      %1917 = sbr.rel (0) target = $region25
    $region24: #{tpu_custom_call.1} parent=1 // pred_region
      %1919 = dma.done [#allocation5], 512
    $region25: #{tpu_custom_call.1} parent=1 // pred_fallthru
      _
    %1920 = vsyncpa [#allocation4], 1
    %1921 = vsyncpa [#allocation5], 1
    %1922 = vsyncpa [#allocation6], 1

</llo_original>
